<compile_context>
chip_gen: v6e
topology: v6e:2x2x1
jax: 0.10.0
libtpu: 0.0.40
codegen_flags: <defaults>
</compile_context>

<pallas_src>
import functools
import math

import jax
import jax.numpy as jnp
from jax.experimental import pallas as pl
from jax.experimental.pallas import tpu as pltpu


PACK_W = 16  # packed lane width for input/output slabs


def _round_up(x, m):
    return ((x + m - 1) // m) * m


def _deform_kernel(n_hidden, compute_dtype,
                   x_ref, w0_ref, b0_ref, wh_ref, bh_ref,
                   w1_ref, b1_ref, w2_ref, b2_ref, out_ref):
    """One row-tile of the deformation MLP.

    x_ref:   (tm, 16) packed [pts3, time, scl3, rot4, opa1, pad4] (f32)
    w0_ref:  (16, W)  input layer folded onto the packed layout (zero rows 4..15)
    wh_ref:  (H, W, W), bh_ref: (H, 1, W)   hidden layers (H >= n_hidden)
    w1_ref:  (W, 4W), b1_ref: (1, 4W)       fused head layer 1
    w2_ref:  (4W, 16), b2_ref: (1, 16)      fused block-diagonal head layer 2
    out_ref: (tm, 16) packed output; cols {3,12..15} pass x through unchanged.
    """
    x = x_ref[...]                                           # (tm, 16) f32

    # feature_out MLP
    h = jnp.dot(x.astype(compute_dtype), w0_ref[...],
                preferred_element_type=jnp.float32) + b0_ref[...]
    for i in range(n_hidden):                                # static unroll
        h = jnp.maximum(h, 0.0)
        h = jnp.dot(h.astype(compute_dtype), wh_ref[i],
                    preferred_element_type=jnp.float32) + bh_ref[i]

    hidden = jnp.maximum(h, 0.0)                             # hoisted head-prefix ReLU

    # fused heads: (tm, W) @ (W, 4W) -> ReLU -> (tm, 4W) @ (4W, 16)
    t = jnp.dot(hidden.astype(compute_dtype), w1_ref[...],
                preferred_element_type=jnp.float32) + b1_ref[...]
    t = jnp.maximum(t, 0.0)
    delta = jnp.dot(t.astype(compute_dtype), w2_ref[...],
                    preferred_element_type=jnp.float32) + b2_ref[...]

    # residual add in packed layout (delta is exactly zero on pass-through cols)
    out_ref[...] = x + delta


def pack_params(params, compute_dtype=jnp.float32):
    """Pack raw per-layer params into the fused layout used by the kernel.

    Weights are stored in `compute_dtype` (f32 or bf16); biases stay f32 so the
    bias/ReLU/residual vector math is always f32 (v5e-safe)."""
    W = params["w0"].shape[1]

    # Fold Linear(4, W) into the 16-wide packed input: rows 0..3 = [px,py,pz,t].
    w0p = jnp.zeros((PACK_W, W), jnp.float32).at[0:4, :].set(params["w0"])

    # Fused head layer 1: (W, 4W)
    w1 = jnp.concatenate(
        [params["pw1"], params["sw1"], params["rw1"], params["ow1"]], axis=1)
    b1 = jnp.concatenate(
        [params["pb1"], params["sb1"], params["rb1"], params["ob1"]], axis=1)

    # Fused head layer 2: block-diagonal (4W, 16), zero-padded.
    # Output cols: pts -> 0:3, (col 3 = time pass-through), scl -> 4:7,
    # rot -> 7:11, opa -> 11:12, cols 12:16 = zero padding.
    w2 = jnp.zeros((4 * W, PACK_W), jnp.float32)
    w2 = w2.at[0 * W:1 * W, 0:3].set(params["pw2"])
    w2 = w2.at[1 * W:2 * W, 4:7].set(params["sw2"])
    w2 = w2.at[2 * W:3 * W, 7:11].set(params["rw2"])
    w2 = w2.at[3 * W:4 * W, 11:12].set(params["ow2"])
    b2 = jnp.zeros((1, PACK_W), jnp.float32)
    b2 = b2.at[:, 0:3].set(params["pb2"])
    b2 = b2.at[:, 4:7].set(params["sb2"])
    b2 = b2.at[:, 7:11].set(params["rb2"])
    b2 = b2.at[:, 11:12].set(params["ob2"])

    n_hidden = int(params["wh"].shape[0])
    wh, bh = params["wh"], params["bh"]
    if n_hidden == 0:  # keep BlockSpecs non-empty; kernel never reads them
        wh = jnp.zeros((1, W, W), jnp.float32)
        bh = jnp.zeros((1, 1, W), jnp.float32)

    return {
        "w0": w0p.astype(compute_dtype), "b0": params["b0"].astype(jnp.float32),
        "wh": wh.astype(compute_dtype),  "bh": bh.astype(jnp.float32),
        "w1": w1.astype(compute_dtype),  "b1": b1.astype(jnp.float32),
        "w2": w2.astype(compute_dtype),  "b2": b2.astype(jnp.float32),
        "n_hidden": n_hidden,
    }


def deform_network_forward(packed, point, scales, rotations, opacity, times_sel,
                           *, tm=1024):
    """Pallas wrapper. Packing / padding / slicing glue in plain JAX."""
    N = point.shape[0]
    W = packed["w0"].shape[1]
    n_hidden = packed["n_hidden"]
    nh_stored = packed["wh"].shape[0]
    compute_dtype = packed["w0"].dtype

    # Packed lane-dense input slab (N, 16).
    x = jnp.concatenate(
        [point[:, :3], times_sel[:, :1], scales[:, :3],
         rotations[:, :4], opacity[:, :1],
         jnp.zeros((N, PACK_W - 12), jnp.float32)], axis=-1).astype(jnp.float32)

    # Row tile: large to amortize ~0.35us/step grid overhead; pad N instead of
    # asserting.  Cap tm so tiny inputs are not grossly over-padded.
    tm = max(8, min(tm, _round_up(N, 8)))
    Np = _round_up(N, tm)
    if Np != N:
        x = jnp.pad(x, ((0, Np - N), (0, 0)))

    def full(shape):
        nd = len(shape)
        return pl.BlockSpec(shape, lambda i, _nd=nd: (0,) * _nd)

    def row(f):
        return pl.BlockSpec((tm, f), lambda i: (i, 0))

    # NOTE: weight/bias BlockSpecs are grid-invariant; at realistic W they could
    # be single-buffered (pl.Buffered(1)).  At W<=256 the extra buffer is
    # negligible, so default buffering is kept for maximal compatibility.
    in_specs = [
        row(PACK_W),
        full((PACK_W, W)), full((1, W)),
        full((nh_stored, W, W)), full((nh_stored, 1, W)),
        full((W, 4 * W)), full((1, 4 * W)),
        full((4 * W, PACK_W)), full((1, PACK_W)),
    ]

    kernel = functools.partial(_deform_kernel, n_hidden, compute_dtype)
    out = pl.pallas_call(
        kernel,
        out_shape=jax.ShapeDtypeStruct((Np, PACK_W), jnp.float32),
        grid_spec=pltpu.PrefetchScalarGridSpec(
            num_scalar_prefetch=0,
            grid=(Np // tm,),
            in_specs=in_specs,
            out_specs=row(PACK_W),
        ),
        compiler_params=pltpu.CompilerParams(
            dimension_semantics=("parallel",),
            vmem_limit_bytes=48 * 1024 * 1024,
        ),
    )(x, packed["w0"], packed["b0"], packed["wh"], packed["bh"],
      packed["w1"], packed["b1"], packed["w2"], packed["b2"])

    pts = out[:N, 0:3]
    scl = out[:N, 4:7]
    rot = out[:N, 7:11]
    opa = out[:N, 11:12]
    return pts, scl, rot, opa


def init_params(key, D, W):
    """Deterministic synthetic init (xavier-uniform weights, PyTorch-default-style
    uniform biases). Weights stored (in, out) so the kernel does x @ W."""
    def xavier(k, fan_in, fan_out):
        lim = math.sqrt(6.0 / (fan_in + fan_out))
        return jax.random.uniform(k, (fan_in, fan_out), jnp.float32, -lim, lim)

    def bias(k, fan_in, fan_out):
        bnd = 1.0 / math.sqrt(fan_in)
        return jax.random.uniform(k, (1, fan_out), jnp.float32, -bnd, bnd)

    keys = iter(jax.random.split(key, 64))
    params = {
        "w0": xavier(next(keys), 4, W), "b0": bias(next(keys), 4, W),
        "wh": jnp.stack([xavier(next(keys), W, W) for _ in range(max(D - 1, 1))])[:D - 1]
        if D > 1 else jnp.zeros((0, W, W), jnp.float32),
        "bh": jnp.stack([bias(next(keys), W, W) for _ in range(max(D - 1, 1))])[:D - 1]
        if D > 1 else jnp.zeros((0, 1, W), jnp.float32),
    }
    for name, odim in (("p", 3), ("s", 3), ("r", 4), ("o", 1)):
        params[f"{name}w1"] = xavier(next(keys), W, W)
        params[f"{name}b1"] = bias(next(keys), W, W)
        params[f"{name}w2"] = xavier(next(keys), W, odim)
        params[f"{name}b2"] = bias(next(keys), W, odim)
    return params


def reference_forward(params, point, scales, rotations, opacity, times_sel):
    """Pure-JAX reference mirroring the PyTorch forward semantics."""
    h = jnp.concatenate([point[:, :3], times_sel[:, :1]], axis=-1)
    h = h @ params["w0"] + params["b0"]
    for i in range(params["wh"].shape[0]):
        h = jnp.maximum(h, 0.0) @ params["wh"][i] + params["bh"][i]

    def head(p):
        t = jnp.maximum(h, 0.0) @ params[f"{p}w1"] + params[f"{p}b1"]
        return jnp.maximum(t, 0.0) @ params[f"{p}w2"] + params[f"{p}b2"]

    return (point[:, :3] + head("p"),
            scales[:, :3] + head("s"),
            rotations[:, :4] + head("r"),
            opacity[:, :1] + head("o"))


if __name__ == "__main__":
    # Small synthetic config: net_width=64, defor_depth=2, N=256 points.
    # args.no_grid=True (HexPlaneField path unused), no_ds/no_dr/no_do=False.
    # TODO(synk): HexPlaneField (args.no_grid=False path) has no definition in the
    # provided module and is not implemented.
    N, W, D = 256, 64, 2
    key = jax.random.PRNGKey(0)
    kp, kx = jax.random.split(key)
    params = init_params(kp, D, W)

    ks = jax.random.split(kx, 5)
    point     = jax.random.normal(ks[0], (N, 6), jnp.float32)   # extra emb cols, only [:, :3] used
    scales    = jax.random.normal(ks[1], (N, 6), jnp.float32)
    rotations = jax.random.normal(ks[2], (N, 8), jnp.float32)
    opacity   = jax.random.normal(ks[3], (N, 1), jnp.float32)
    times_sel = jax.random.uniform(ks[4], (N, 1), jnp.float32)

    refs = reference_forward(params, point, scales, rotations, opacity, times_sel)

    # f32 matmul path: strict check against the pure-JAX reference.
    packed_f32 = pack_params(params, jnp.float32)
    outs = deform_network_forward(packed_f32, point, scales, rotations, opacity,
                                  times_sel, tm=1024)
    outs = jax.block_until_ready(outs)
    for o, r in zip(outs, refs):
        assert o.shape == r.shape and o.dtype == r.dtype
        assert jnp.max(jnp.abs(o - r)) < 1e-4, "f32 mismatch vs pure-JAX reference"

    # bf16 matmul-operand path (MXU fast path on v5e/v6e/v7x; f32 accumulate,
    # f32 bias/ReLU/residual): looser tolerance.
    packed_bf16 = pack_params(params, jnp.bfloat16)
    outs_bf16 = deform_network_forward(packed_bf16, point, scales, rotations,
                                       opacity, times_sel, tm=1024)
    outs_bf16 = jax.block_until_ready(outs_bf16)
    for o, r in zip(outs_bf16, refs):
        assert o.shape == r.shape
        assert jnp.max(jnp.abs(o - r)) < 1.5e-1, "bf16 mismatch vs pure-JAX reference"

    print("KERNEL_OK")
</pallas_src>

<mosaic_0001>
module attributes {stable_mosaic.version = 11 : i64} {
  func.func @_deform_kernel(%arg0: i32, %arg1: memref<256x16xf32, #tpu.memory_space<vmem>>, %arg2: memref<16x64xf32, #tpu.memory_space<vmem>>, %arg3: memref<1x64xf32, #tpu.memory_space<vmem>>, %arg4: memref<1x64x64xf32, #tpu.memory_space<vmem>>, %arg5: memref<1x1x64xf32, #tpu.memory_space<vmem>>, %arg6: memref<64x256xf32, #tpu.memory_space<vmem>>, %arg7: memref<1x256xf32, #tpu.memory_space<vmem>>, %arg8: memref<256x16xf32, #tpu.memory_space<vmem>>, %arg9: memref<1x16xf32, #tpu.memory_space<vmem>>, %arg10: memref<256x16xf32, #tpu.memory_space<vmem>>) attributes {dimension_semantics = [#tpu.dimension_semantics<parallel>], iteration_bounds = array<i64: 1>, scalar_prefetch = 0 : i64, scratch_operands = 0 : i64, tpu.core_type = #tpu.core_type<tc>, window_params = [{transform_indices = @transform_0, window_bounds = array<i64: 256, 16>}, {pipeline_mode = #tpu.pipeline_mode<synchronous>, transform_indices = @transform_1, window_bounds = array<i64: 16, 64>}, {pipeline_mode = #tpu.pipeline_mode<synchronous>, transform_indices = @transform_2, window_bounds = array<i64: 1, 64>}, {pipeline_mode = #tpu.pipeline_mode<synchronous>, transform_indices = @transform_3, window_bounds = array<i64: 1, 64, 64>}, {pipeline_mode = #tpu.pipeline_mode<synchronous>, transform_indices = @transform_4, window_bounds = array<i64: 1, 1, 64>}, {pipeline_mode = #tpu.pipeline_mode<synchronous>, transform_indices = @transform_5, window_bounds = array<i64: 64, 256>}, {pipeline_mode = #tpu.pipeline_mode<synchronous>, transform_indices = @transform_6, window_bounds = array<i64: 1, 256>}, {pipeline_mode = #tpu.pipeline_mode<synchronous>, transform_indices = @transform_7, window_bounds = array<i64: 256, 16>}, {pipeline_mode = #tpu.pipeline_mode<synchronous>, transform_indices = @transform_8, window_bounds = array<i64: 1, 16>}, {transform_indices = @transform_9, window_bounds = array<i64: 256, 16>}]} {
    %c0 = arith.constant 0 : index
    %c0_0 = arith.constant 0 : index
    %0 = vector.load %arg1[%c0, %c0_0] : memref<256x16xf32, #tpu.memory_space<vmem>>, vector<256x16xf32>
    %c0_1 = arith.constant 0 : index
    %c0_2 = arith.constant 0 : index
    %1 = vector.load %arg2[%c0_1, %c0_2] : memref<16x64xf32, #tpu.memory_space<vmem>>, vector<16x64xf32>
    %cst = arith.constant dense<0.000000e+00> : vector<256x64xf32>
    %2 = tpu.matmul %0, %1, %cst {dimension_numbers = #tpu.dot_dimension_numbers<[1], [0], [0], [1], [0, 0, 1, 1], [], []>} : vector<256x16xf32>, vector<16x64xf32>, vector<256x64xf32> -> vector<256x64xf32>
    %c0_3 = arith.constant 0 : index
    %c0_4 = arith.constant 0 : index
    %3 = vector.load %arg3[%c0_3, %c0_4] : memref<1x64xf32, #tpu.memory_space<vmem>>, vector<1x64xf32>
    %4 = vector.broadcast %3 : vector<1x64xf32> to vector<256x64xf32>
    %5 = arith.addf %2, %4 : vector<256x64xf32>
    %cst_5 = arith.constant 0.000000e+00 : f32
    %6 = vector.broadcast %cst_5 : f32 to vector<256x64xf32>
    %7 = arith.maximumf %5, %6 : vector<256x64xf32>
    %c0_6 = arith.constant 0 : index
    %c0_7 = arith.constant 0 : index
    %c0_8 = arith.constant 0 : index
    %8 = vector.load %arg4[%c0_6, %c0_7, %c0_8] : memref<1x64x64xf32, #tpu.memory_space<vmem>>, vector<1x64x64xf32>
    %9 = vector.shape_cast %8 : vector<1x64x64xf32> to vector<64x64xf32>
    %cst_9 = arith.constant dense<0.000000e+00> : vector<256x64xf32>
    %10 = tpu.matmul %7, %9, %cst_9 {dimension_numbers = #tpu.dot_dimension_numbers<[1], [0], [0], [1], [0, 0, 1, 1], [], []>} : vector<256x64xf32>, vector<64x64xf32>, vector<256x64xf32> -> vector<256x64xf32>
    %c0_10 = arith.constant 0 : index
    %c0_11 = arith.constant 0 : index
    %c0_12 = arith.constant 0 : index
    %11 = vector.load %arg5[%c0_10, %c0_11, %c0_12] : memref<1x1x64xf32, #tpu.memory_space<vmem>>, vector<1x1x64xf32>
    %12 = vector.shape_cast %11 : vector<1x1x64xf32> to vector<1x64xf32>
    %13 = vector.broadcast %12 : vector<1x64xf32> to vector<256x64xf32>
    %14 = arith.addf %10, %13 : vector<256x64xf32>
    %cst_13 = arith.constant 0.000000e+00 : f32
    %15 = vector.broadcast %cst_13 : f32 to vector<256x64xf32>
    %16 = arith.maximumf %14, %15 : vector<256x64xf32>
    %c0_14 = arith.constant 0 : index
    %c0_15 = arith.constant 0 : index
    %17 = vector.load %arg6[%c0_14, %c0_15] : memref<64x256xf32, #tpu.memory_space<vmem>>, vector<64x256xf32>
    %cst_16 = arith.constant dense<0.000000e+00> : vector<256x256xf32>
    %18 = tpu.matmul %16, %17, %cst_16 {dimension_numbers = #tpu.dot_dimension_numbers<[1], [0], [0], [1], [0, 0, 1, 1], [], []>} : vector<256x64xf32>, vector<64x256xf32>, vector<256x256xf32> -> vector<256x256xf32>
    %c0_17 = arith.constant 0 : index
    %c0_18 = arith.constant 0 : index
    %19 = vector.load %arg7[%c0_17, %c0_18] : memref<1x256xf32, #tpu.memory_space<vmem>>, vector<1x256xf32>
    %20 = vector.broadcast %19 : vector<1x256xf32> to vector<256x256xf32>
    %21 = arith.addf %18, %20 : vector<256x256xf32>
    %cst_19 = arith.constant 0.000000e+00 : f32
    %22 = vector.broadcast %cst_19 : f32 to vector<256x256xf32>
    %23 = arith.maximumf %21, %22 : vector<256x256xf32>
    %c0_20 = arith.constant 0 : index
    %c0_21 = arith.constant 0 : index
    %24 = vector.load %arg8[%c0_20, %c0_21] : memref<256x16xf32, #tpu.memory_space<vmem>>, vector<256x16xf32>
    %cst_22 = arith.constant dense<0.000000e+00> : vector<256x16xf32>
    %25 = tpu.matmul %23, %24, %cst_22 {dimension_numbers = #tpu.dot_dimension_numbers<[1], [0], [0], [1], [0, 0, 1, 1], [], []>} : vector<256x256xf32>, vector<256x16xf32>, vector<256x16xf32> -> vector<256x16xf32>
    %c0_23 = arith.constant 0 : index
    %c0_24 = arith.constant 0 : index
    %26 = vector.load %arg9[%c0_23, %c0_24] : memref<1x16xf32, #tpu.memory_space<vmem>>, vector<1x16xf32>
    %27 = vector.broadcast %26 : vector<1x16xf32> to vector<256x16xf32>
    %28 = arith.addf %25, %27 : vector<256x16xf32>
    %29 = arith.addf %0, %28 : vector<256x16xf32>
    %c0_25 = arith.constant 0 : index
    %c0_26 = arith.constant 0 : index
    %30 = vector.load %arg10[%c0_25, %c0_26] : memref<256x16xf32, #tpu.memory_space<vmem>>, vector<256x16xf32>
    tpu.vector_store %arg10[%c0_25, %c0_26], %29 {strides = array<i32>} : memref<256x16xf32, #tpu.memory_space<vmem>>, vector<256x16xf32>,
    return
  }
  func.func @transform_0(%arg0: i32) -> (i32, i32) {
    %c0_i32 = arith.constant 0 : i32
    %c0_i32_0 = arith.constant 0 : i32
    return %arg0, %c0_i32 : i32, i32
  }
  func.func @transform_1(%arg0: i32) -> (i32, i32) {
    %c0_i32 = arith.constant 0 : i32
    %c0_i32_0 = arith.constant 0 : i32
    %c0_i32_1 = arith.constant 0 : i32
    return %c0_i32, %c0_i32_0 : i32, i32
  }
  func.func @transform_2(%arg0: i32) -> (i32, i32) {
    %c0_i32 = arith.constant 0 : i32
    %c0_i32_0 = arith.constant 0 : i32
    %c0_i32_1 = arith.constant 0 : i32
    return %c0_i32, %c0_i32_0 : i32, i32
  }
  func.func @transform_3(%arg0: i32) -> (i32, i32, i32) {
    %c0_i32 = arith.constant 0 : i32
    %c0_i32_0 = arith.constant 0 : i32
    %c0_i32_1 = arith.constant 0 : i32
    %c0_i32_2 = arith.constant 0 : i32
    return %c0_i32, %c0_i32_0, %c0_i32_1 : i32, i32, i32
  }
  func.func @transform_4(%arg0: i32) -> (i32, i32, i32) {
    %c0_i32 = arith.constant 0 : i32
    %c0_i32_0 = arith.constant 0 : i32
    %c0_i32_1 = arith.constant 0 : i32
    %c0_i32_2 = arith.constant 0 : i32
    return %c0_i32, %c0_i32_0, %c0_i32_1 : i32, i32, i32
  }
  func.func @transform_5(%arg0: i32) -> (i32, i32) {
    %c0_i32 = arith.constant 0 : i32
    %c0_i32_0 = arith.constant 0 : i32
    %c0_i32_1 = arith.constant 0 : i32
    return %c0_i32, %c0_i32_0 : i32, i32
  }
  func.func @transform_6(%arg0: i32) -> (i32, i32) {
    %c0_i32 = arith.constant 0 : i32
    %c0_i32_0 = arith.constant 0 : i32
    %c0_i32_1 = arith.constant 0 : i32
    return %c0_i32, %c0_i32_0 : i32, i32
  }
  func.func @transform_7(%arg0: i32) -> (i32, i32) {
    %c0_i32 = arith.constant 0 : i32
    %c0_i32_0 = arith.constant 0 : i32
    %c0_i32_1 = arith.constant 0 : i32
    return %c0_i32, %c0_i32_0 : i32, i32
  }
  func.func @transform_8(%arg0: i32) -> (i32, i32) {
    %c0_i32 = arith.constant 0 : i32
    %c0_i32_0 = arith.constant 0 : i32
    %c0_i32_1 = arith.constant 0 : i32
    return %c0_i32, %c0_i32_0 : i32, i32
  }
  func.func @transform_9(%arg0: i32) -> (i32, i32) {
    %c0_i32 = arith.constant 0 : i32
    %c0_i32_0 = arith.constant 0 : i32
    return %arg0, %c0_i32 : i32, i32
  }
}

</mosaic_0001>

<llo_original>
// kernel: tpu_custom_call.1
$region0: #{tpu_custom_call.1}
  #allocation0 [shape = 'u32[]', space=smem, size = 0x4, offset = 0x4, fixed_abs, tag = 'smem constant byte address 0x4 - core index']
  #allocation1 [shape = 'u32[144,128]{1,0:T(1,128)}', space=vmem, size = 0x12000, scoped, tag = 'internal scratch']
  %s0 = inlined_call_operand.vmem [shape: f32[256,16], index: 0, kind: input, shape index: {}]
  %s1 = inlined_call_operand.vmem [shape: f32[16,64], index: 1, kind: input, shape index: {}]
  %s2 = inlined_call_operand.vmem [shape: f32[1,64], index: 2, kind: input, shape index: {}]
  %s3 = inlined_call_operand.vmem [shape: f32[1,64,64], index: 3, kind: input, shape index: {}]
  %s4 = inlined_call_operand.vmem [shape: f32[1,1,64], index: 4, kind: input, shape index: {}]
  %s5 = inlined_call_operand.vmem [shape: f32[64,256], index: 5, kind: input, shape index: {}]
  %s6 = inlined_call_operand.vmem [shape: f32[1,256], index: 6, kind: input, shape index: {}]
  %s7 = inlined_call_operand.vmem [shape: f32[256,16], index: 7, kind: input, shape index: {}]
  %s8 = inlined_call_operand.vmem [shape: f32[1,16], index: 8, kind: input, shape index: {}]
  %s9 = inlined_call_operand.vmem [shape: f32[256,16], index: 9, kind: output, shape index: {}]
  %s10 = sld [smem:[#allocation0]]
  $region46: #{tpu_custom_call.1} parent=0
    _
  %s12 = ssub.s32 1, %s10
  %s13 = scalar_select 0, %s12, %s10
  // Predicated region
  $region2: #{tpu_custom_call.1} parent=0 // pred_check
    _
  $region3: #{tpu_custom_call.1} parent=0 // pred_check_branch
    %15 = sbr.rel (0) target = $region5
  $region4: #{tpu_custom_call.1} parent=0 // pred_region
    _
  $region5: #{tpu_custom_call.1} parent=0 // pred_fallthru
    _
  // Predicated region
  $region6: #{tpu_custom_call.1} parent=0 // pred_check
    _
  $region7: #{tpu_custom_call.1} parent=0 // pred_check_branch
    %17 = sbr.rel (0) target = $region9
  $region8: #{tpu_custom_call.1} parent=0 // pred_region
    _
  $region9: #{tpu_custom_call.1} parent=0 // pred_fallthru
    _
  // Predicated region
  $region10: #{tpu_custom_call.1} parent=0 // pred_check
    _
  $region11: #{tpu_custom_call.1} parent=0 // pred_check_branch
    %19 = sbr.rel (0) target = $region13
  $region12: #{tpu_custom_call.1} parent=0 // pred_region
    _
  $region13: #{tpu_custom_call.1} parent=0 // pred_fallthru
    _
  // Predicated region
  $region14: #{tpu_custom_call.1} parent=0 // pred_check
    _
  $region15: #{tpu_custom_call.1} parent=0 // pred_check_branch
    %21 = sbr.rel (0) target = $region17
  $region16: #{tpu_custom_call.1} parent=0 // pred_region
    _
  $region17: #{tpu_custom_call.1} parent=0 // pred_fallthru
    _
  // Predicated region
  $region18: #{tpu_custom_call.1} parent=0 // pred_check
    _
  $region19: #{tpu_custom_call.1} parent=0 // pred_check_branch
    %23 = sbr.rel (0) target = $region21
  $region20: #{tpu_custom_call.1} parent=0 // pred_region
    _
  $region21: #{tpu_custom_call.1} parent=0 // pred_fallthru
    _
  // Predicated region
  $region22: #{tpu_custom_call.1} parent=0 // pred_check
    _
  $region23: #{tpu_custom_call.1} parent=0 // pred_check_branch
    %25 = sbr.rel (0) target = $region25
  $region24: #{tpu_custom_call.1} parent=0 // pred_region
    _
  $region25: #{tpu_custom_call.1} parent=0 // pred_fallthru
    _
  // Predicated region
  $region26: #{tpu_custom_call.1} parent=0 // pred_check
    _
  $region27: #{tpu_custom_call.1} parent=0 // pred_check_branch
    %27 = sbr.rel (0) target = $region29
  $region28: #{tpu_custom_call.1} parent=0 // pred_region
    _
  $region29: #{tpu_custom_call.1} parent=0 // pred_fallthru
    _
  // Predicated region
  $region30: #{tpu_custom_call.1} parent=0 // pred_check
    _
  $region31: #{tpu_custom_call.1} parent=0 // pred_check_branch
    %29 = sbr.rel (0) target = $region33
  $region32: #{tpu_custom_call.1} parent=0 // pred_region
    _
  $region33: #{tpu_custom_call.1} parent=0 // pred_fallthru
    _
  // Predicated region
  $region34: #{tpu_custom_call.1} parent=0 // pred_check
    _
  $region35: #{tpu_custom_call.1} parent=0 // pred_check_branch
    %31 = sbr.rel (0) target = $region37
  $region36: #{tpu_custom_call.1} parent=0 // pred_region
    _
  $region37: #{tpu_custom_call.1} parent=0 // pred_fallthru
    _
  %v32 = vld [vmem:[%s0] sm:$0xff]
  %v33 = vld [vmem:[%s0 + $0x8] sm:$0xff]
  %v34 = vld [vmem:[%s0 + $0x10] sm:$0xff]
  %v35 = vld [vmem:[%s0 + $0x18] sm:$0xff]
  %v36 = vld [vmem:[%s0 + $0x20] sm:$0xff]
  %v37 = vld [vmem:[%s0 + $0x28] sm:$0xff]
  %v38 = vld [vmem:[%s0 + $0x30] sm:$0xff]
  %v39 = vld [vmem:[%s0 + $0x38] sm:$0xff]
  %v40 = vld [vmem:[%s0 + $0x40] sm:$0xff]
  %v41 = vld [vmem:[%s0 + $0x48] sm:$0xff]
  %v42 = vld [vmem:[%s0 + $0x50] sm:$0xff]
  %v43 = vld [vmem:[%s0 + $0x58] sm:$0xff]
  %v44 = vld [vmem:[%s0 + $0x60] sm:$0xff]
  %v45 = vld [vmem:[%s0 + $0x68] sm:$0xff]
  %v46 = vld [vmem:[%s0 + $0x70] sm:$0xff]
  %v47 = vld [vmem:[%s0 + $0x78] sm:$0xff]
  %v48 = vld [vmem:[%s0 + $0x80] sm:$0xff]
  %v49 = vld [vmem:[%s0 + $0x88] sm:$0xff]
  %v50 = vld [vmem:[%s0 + $0x90] sm:$0xff]
  %v51 = vld [vmem:[%s0 + $0x98] sm:$0xff]
  %v52 = vld [vmem:[%s0 + $0xa0] sm:$0xff]
  %v53 = vld [vmem:[%s0 + $0xa8] sm:$0xff]
  %v54 = vld [vmem:[%s0 + $0xb0] sm:$0xff]
  %v55 = vld [vmem:[%s0 + $0xb8] sm:$0xff]
  %v56 = vld [vmem:[%s0 + $0xc0] sm:$0xff]
  %v57 = vld [vmem:[%s0 + $0xc8] sm:$0xff]
  %v58 = vld [vmem:[%s0 + $0xd0] sm:$0xff]
  %v59 = vld [vmem:[%s0 + $0xd8] sm:$0xff]
  %v60 = vld [vmem:[%s0 + $0xe0] sm:$0xff]
  %v61 = vld [vmem:[%s0 + $0xe8] sm:$0xff]
  %v62 = vld [vmem:[%s0 + $0xf0] sm:$0xff]
  %v63 = vld [vmem:[%s0 + $0xf8] sm:$0xff]
  %v64 = vld [vmem:[%s1] sm:$0xff]
  %v65 = vld [vmem:[%s1 + $0x8] sm:$0xff]
  %v66 = vld [vmem:[%s2] sm:$0x1]
  %v68 = vlaneseq
  %v69 = vshrl.u32 %v68, 7
  %v70 = vsub.s32 0, %v69
  %v71 = vrot.slane %v66, %v70
  %vm73 = vcmask 130048
  %v75 = vsel %vm73, %v32, 0
  %v78 = vsel %vm73, %v33, 0
  %v81 = vsel %vm73, %v34, 0
  %v84 = vsel %vm73, %v35, 0
  %v87 = vsel %vm73, %v36, 0
  %v90 = vsel %vm73, %v37, 0
  %v93 = vsel %vm73, %v38, 0
  %v96 = vsel %vm73, %v39, 0
  %v99 = vsel %vm73, %v40, 0
  %v102 = vsel %vm73, %v41, 0
  %v105 = vsel %vm73, %v42, 0
  %v108 = vsel %vm73, %v43, 0
  %v111 = vsel %vm73, %v44, 0
  %v114 = vsel %vm73, %v45, 0
  %v117 = vsel %vm73, %v46, 0
  %v120 = vsel %vm73, %v47, 0
  %v123 = vsel %vm73, %v48, 0
  %v126 = vsel %vm73, %v49, 0
  %v129 = vsel %vm73, %v50, 0
  %v132 = vsel %vm73, %v51, 0
  %v135 = vsel %vm73, %v52, 0
  %v138 = vsel %vm73, %v53, 0
  %v141 = vsel %vm73, %v54, 0
  %v144 = vsel %vm73, %v55, 0
  %v147 = vsel %vm73, %v56, 0
  %v150 = vsel %vm73, %v57, 0
  %v153 = vsel %vm73, %v58, 0
  %v156 = vsel %vm73, %v59, 0
  %v159 = vsel %vm73, %v60, 0
  %v162 = vsel %vm73, %v61, 0
  %v165 = vsel %vm73, %v62, 0
  %v168 = vsel %vm73, %v63, 0
  %170 = vmatprep.subr.mxu0 0.0
  %171 = vmatpush1.msra.mxu0 0.0
  %172 = vmatprep.subr.mxu0 0.0
  %173 = vmatpush1.msra.mxu0 0.0
  %174 = vmatprep.subr.mxu0 0.0
  %175 = vmatpush1.msra.mxu0 0.0
  %176 = vmatprep.subr.mxu0 0.0
  %177 = vmatpush1.msra.mxu0 0.0
  %178 = vmatprep.subr.mxu0 0.0
  %179 = vmatpush1.msra.mxu0 0.0
  %180 = vmatprep.subr.mxu0 0.0
  %181 = vmatpush1.msra.mxu0 0.0
  %182 = vmatprep.subr.mxu0 0.0
  %183 = vmatpush1.msra.mxu0 0.0
  %184 = vmatprep.subr.mxu0 0.0
  %185 = vmatpush1.msra.mxu0 0.0
  %186 = vmatprep.subr.mxu0 0.0
  %187 = vmatpush1.msra.mxu0 0.0
  %188 = vmatprep.subr.mxu0 0.0
  %189 = vmatpush1.msra.mxu0 0.0
  %190 = vmatprep.subr.mxu0 0.0
  %191 = vmatpush1.msra.mxu0 0.0
  %192 = vmatprep.subr.mxu0 0.0
  %193 = vmatpush1.msra.mxu0 0.0
  %194 = vmatprep.subr.mxu0 0.0
  %195 = vmatpush1.msra.mxu0 0.0
  %196 = vmatprep.subr.mxu0 0.0
  %197 = vmatpush1.msra.mxu0 0.0
  %198 = vmatprep.subr.mxu0 0.0
  %199 = vmatpush1.msra.mxu0 %v65
  %200 = vmatprep.subr.mxu0 0.0
  %201 = vmatpush1.msra.mxu0 %v64
  %202 = vmatprep.subr.mxu0 0.0
  %203 = vmatpush2.msra.mxu0 0.0
  %204 = vmatprep.subr.mxu0 0.0
  %205 = vmatpush2.msra.mxu0 0.0
  %206 = vmatprep.subr.mxu0 0.0
  %207 = vmatpush2.msra.mxu0 0.0
  %208 = vmatprep.subr.mxu0 0.0
  %209 = vmatpush2.msra.mxu0 0.0
  %210 = vmatprep.subr.mxu0 0.0
  %211 = vmatpush2.msra.mxu0 0.0
  %212 = vmatprep.subr.mxu0 0.0
  %213 = vmatpush2.msra.mxu0 0.0
  %214 = vmatprep.subr.mxu0 0.0
  %215 = vmatpush2.msra.mxu0 0.0
  %216 = vmatprep.subr.mxu0 0.0
  %217 = vmatpush2.msra.mxu0 0.0
  %218 = vmatprep.subr.mxu0 0.0
  %219 = vmatpush2.msra.mxu0 0.0
  %220 = vmatprep.subr.mxu0 0.0
  %221 = vmatpush2.msra.mxu0 0.0
  %222 = vmatprep.subr.mxu0 0.0
  %223 = vmatpush2.msra.mxu0 0.0
  %224 = vmatprep.subr.mxu0 0.0
  %225 = vmatpush2.msra.mxu0 0.0
  %226 = vmatprep.subr.mxu0 0.0
  %227 = vmatpush2.msra.mxu0 0.0
  %228 = vmatprep.subr.mxu0 0.0
  %229 = vmatpush2.msra.mxu0 0.0
  %230 = vmatprep.subr.mxu0 0.0
  %231 = vmatpush2.msra.mxu0 0.0
  %232 = vmatprep.subr.mxu0 0.0
  %233 = vmatpush2.msra.mxu0 0.0
  %234 = vmatprep.mubr.f32.mxu0 0.0
  %235 = vmatmul.mubr.f32.gmra.mxu0 %v75
  %v236 = vpop.f32.mrf.mxu0
  %v237 = vadd.f32 %v71, %v236
  %v238 = vpop.f32.mrf.mxu0
  %239 = vmatprep.mubr.f32.mxu0 0.0
  %240 = vmatmul.mubr.f32.gmra.mxu0 %v78
  %v241 = vpop.f32.mrf.mxu0
  %v242 = vadd.f32 %v71, %v241
  %v243 = vpop.f32.mrf.mxu0
  %244 = vmatprep.mubr.f32.mxu0 0.0
  %245 = vmatmul.mubr.f32.gmra.mxu0 %v81
  %v246 = vpop.f32.mrf.mxu0
  %v247 = vadd.f32 %v71, %v246
  %v248 = vpop.f32.mrf.mxu0
  %249 = vmatprep.mubr.f32.mxu0 0.0
  %250 = vmatmul.mubr.f32.gmra.mxu0 %v84
  %v251 = vpop.f32.mrf.mxu0
  %v252 = vadd.f32 %v71, %v251
  %v253 = vpop.f32.mrf.mxu0
  %254 = vmatprep.mubr.f32.mxu0 0.0
  %255 = vmatmul.mubr.f32.gmra.mxu0 %v87
  %v256 = vpop.f32.mrf.mxu0
  %v257 = vadd.f32 %v71, %v256
  %v258 = vpop.f32.mrf.mxu0
  %259 = vmatprep.mubr.f32.mxu0 0.0
  %260 = vmatmul.mubr.f32.gmra.mxu0 %v90
  %v261 = vpop.f32.mrf.mxu0
  %v262 = vadd.f32 %v71, %v261
  %v263 = vpop.f32.mrf.mxu0
  %264 = vmatprep.mubr.f32.mxu0 0.0
  %265 = vmatmul.mubr.f32.gmra.mxu0 %v93
  %v266 = vpop.f32.mrf.mxu0
  %v267 = vadd.f32 %v71, %v266
  %v268 = vpop.f32.mrf.mxu0
  %269 = vmatprep.mubr.f32.mxu0 0.0
  %270 = vmatmul.mubr.f32.gmra.mxu0 %v96
  %v271 = vpop.f32.mrf.mxu0
  %v272 = vadd.f32 %v71, %v271
  %v273 = vpop.f32.mrf.mxu0
  %274 = vmatprep.mubr.f32.mxu0 0.0
  %275 = vmatmul.mubr.f32.gmra.mxu0 %v99
  %v276 = vpop.f32.mrf.mxu0
  %v277 = vadd.f32 %v71, %v276
  %v278 = vpop.f32.mrf.mxu0
  %279 = vmatprep.mubr.f32.mxu0 0.0
  %280 = vmatmul.mubr.f32.gmra.mxu0 %v102
  %v281 = vpop.f32.mrf.mxu0
  %v282 = vadd.f32 %v71, %v281
  %v283 = vpop.f32.mrf.mxu0
  %284 = vmatprep.mubr.f32.mxu0 0.0
  %285 = vmatmul.mubr.f32.gmra.mxu0 %v105
  %v286 = vpop.f32.mrf.mxu0
  %v287 = vadd.f32 %v71, %v286
  %v288 = vpop.f32.mrf.mxu0
  %289 = vmatprep.mubr.f32.mxu0 0.0
  %290 = vmatmul.mubr.f32.gmra.mxu0 %v108
  %v291 = vpop.f32.mrf.mxu0
  %v292 = vadd.f32 %v71, %v291
  %v293 = vpop.f32.mrf.mxu0
  %294 = vmatprep.mubr.f32.mxu0 0.0
  %295 = vmatmul.mubr.f32.gmra.mxu0 %v111
  %v296 = vpop.f32.mrf.mxu0
  %v297 = vadd.f32 %v71, %v296
  %v298 = vpop.f32.mrf.mxu0
  %299 = vmatprep.mubr.f32.mxu0 0.0
  %300 = vmatmul.mubr.f32.gmra.mxu0 %v114
  %v301 = vpop.f32.mrf.mxu0
  %v302 = vadd.f32 %v71, %v301
  %v303 = vpop.f32.mrf.mxu0
  %304 = vmatprep.mubr.f32.mxu0 0.0
  %305 = vmatmul.mubr.f32.gmra.mxu0 %v117
  %v306 = vpop.f32.mrf.mxu0
  %v307 = vadd.f32 %v71, %v306
  %v308 = vpop.f32.mrf.mxu0
  %309 = vmatprep.mubr.f32.mxu0 0.0
  %310 = vmatmul.mubr.f32.gmra.mxu0 %v120
  %v311 = vpop.f32.mrf.mxu0
  %v312 = vadd.f32 %v71, %v311
  %v313 = vpop.f32.mrf.mxu0
  %314 = vmatprep.mubr.f32.mxu0 0.0
  %315 = vmatmul.mubr.f32.gmra.mxu0 %v123
  %v316 = vpop.f32.mrf.mxu0
  %v317 = vadd.f32 %v71, %v316
  %v318 = vpop.f32.mrf.mxu0
  %319 = vmatprep.mubr.f32.mxu0 0.0
  %320 = vmatmul.mubr.f32.gmra.mxu0 %v126
  %v321 = vpop.f32.mrf.mxu0
  %v322 = vadd.f32 %v71, %v321
  %v323 = vpop.f32.mrf.mxu0
  %324 = vmatprep.mubr.f32.mxu0 0.0
  %325 = vmatmul.mubr.f32.gmra.mxu0 %v129
  %v326 = vpop.f32.mrf.mxu0
  %v327 = vadd.f32 %v71, %v326
  %v328 = vpop.f32.mrf.mxu0
  %329 = vmatprep.mubr.f32.mxu0 0.0
  %330 = vmatmul.mubr.f32.gmra.mxu0 %v132
  %v331 = vpop.f32.mrf.mxu0
  %v332 = vadd.f32 %v71, %v331
  %v333 = vpop.f32.mrf.mxu0
  %334 = vmatprep.mubr.f32.mxu0 0.0
  %335 = vmatmul.mubr.f32.gmra.mxu0 %v135
  %v336 = vpop.f32.mrf.mxu0
  %v337 = vadd.f32 %v71, %v336
  %v338 = vpop.f32.mrf.mxu0
  %339 = vmatprep.mubr.f32.mxu0 0.0
  %340 = vmatmul.mubr.f32.gmra.mxu0 %v138
  %v341 = vpop.f32.mrf.mxu0
  %v342 = vadd.f32 %v71, %v341
  %v343 = vpop.f32.mrf.mxu0
  %344 = vmatprep.mubr.f32.mxu0 0.0
  %345 = vmatmul.mubr.f32.gmra.mxu0 %v141
  %v346 = vpop.f32.mrf.mxu0
  %v347 = vadd.f32 %v71, %v346
  %v348 = vpop.f32.mrf.mxu0
  %349 = vmatprep.mubr.f32.mxu0 0.0
  %350 = vmatmul.mubr.f32.gmra.mxu0 %v144
  %v351 = vpop.f32.mrf.mxu0
  %v352 = vadd.f32 %v71, %v351
  %v353 = vpop.f32.mrf.mxu0
  %354 = vmatprep.mubr.f32.mxu0 0.0
  %355 = vmatmul.mubr.f32.gmra.mxu0 %v147
  %v356 = vpop.f32.mrf.mxu0
  %v357 = vadd.f32 %v71, %v356
  %v358 = vpop.f32.mrf.mxu0
  %359 = vmatprep.mubr.f32.mxu0 0.0
  %360 = vmatmul.mubr.f32.gmra.mxu0 %v150
  %v361 = vpop.f32.mrf.mxu0
  %v362 = vadd.f32 %v71, %v361
  %v363 = vpop.f32.mrf.mxu0
  %364 = vmatprep.mubr.f32.mxu0 0.0
  %365 = vmatmul.mubr.f32.gmra.mxu0 %v153
  %v366 = vpop.f32.mrf.mxu0
  %v367 = vadd.f32 %v71, %v366
  %v368 = vpop.f32.mrf.mxu0
  %369 = vmatprep.mubr.f32.mxu0 0.0
  %370 = vmatmul.mubr.f32.gmra.mxu0 %v156
  %v371 = vpop.f32.mrf.mxu0
  %v372 = vadd.f32 %v71, %v371
  %v373 = vpop.f32.mrf.mxu0
  %374 = vmatprep.mubr.f32.mxu0 0.0
  %375 = vmatmul.mubr.f32.gmra.mxu0 %v159
  %v376 = vpop.f32.mrf.mxu0
  %v377 = vadd.f32 %v71, %v376
  %v378 = vpop.f32.mrf.mxu0
  %379 = vmatprep.mubr.f32.mxu0 0.0
  %380 = vmatmul.mubr.f32.gmra.mxu0 %v162
  %v381 = vpop.f32.mrf.mxu0
  %v382 = vadd.f32 %v71, %v381
  %v383 = vpop.f32.mrf.mxu0
  %384 = vmatprep.mubr.f32.mxu0 0.0
  %385 = vmatmul.mubr.f32.gmra.mxu0 %v165
  %v386 = vpop.f32.mrf.mxu0
  %v387 = vadd.f32 %v71, %v386
  %v388 = vpop.f32.mrf.mxu0
  %389 = vmatprep.mubr.f32.mxu0 0.0
  %390 = vmatmul.mubr.f32.gmra.mxu0 %v168
  %v391 = vpop.f32.mrf.mxu0
  %v392 = vadd.f32 %v71, %v391
  %v393 = vpop.f32.mrf.mxu0
  %394 = vdwg.mxu0
  %v395 = vmax.f32 %v237, 0.0
  %v396 = vmax.f32 %v242, 0.0
  %v397 = vmax.f32 %v247, 0.0
  %v398 = vmax.f32 %v252, 0.0
  %v399 = vmax.f32 %v257, 0.0
  %v400 = vmax.f32 %v262, 0.0
  %v401 = vmax.f32 %v267, 0.0
  %v402 = vmax.f32 %v272, 0.0
  %v403 = vmax.f32 %v277, 0.0
  %v404 = vmax.f32 %v282, 0.0
  %v405 = vmax.f32 %v287, 0.0
  %v406 = vmax.f32 %v292, 0.0
  %v407 = vmax.f32 %v297, 0.0
  %v408 = vmax.f32 %v302, 0.0
  %v409 = vmax.f32 %v307, 0.0
  %v410 = vmax.f32 %v312, 0.0
  %v411 = vmax.f32 %v317, 0.0
  %v412 = vmax.f32 %v322, 0.0
  %v413 = vmax.f32 %v327, 0.0
  %v414 = vmax.f32 %v332, 0.0
  %v415 = vmax.f32 %v337, 0.0
  %v416 = vmax.f32 %v342, 0.0
  %v417 = vmax.f32 %v347, 0.0
  %v418 = vmax.f32 %v352, 0.0
  %v419 = vmax.f32 %v357, 0.0
  %v420 = vmax.f32 %v362, 0.0
  %v421 = vmax.f32 %v367, 0.0
  %v422 = vmax.f32 %v372, 0.0
  %v423 = vmax.f32 %v377, 0.0
  %v424 = vmax.f32 %v382, 0.0
  %v425 = vmax.f32 %v387, 0.0
  %v426 = vmax.f32 %v392, 0.0
  %v427 = vld [vmem:[%s3] sm:$0xff]
  %v428 = vld [vmem:[%s3 + $0x8] sm:$0xff]
  %v429 = vld [vmem:[%s3 + $0x10] sm:$0xff]
  %v430 = vld [vmem:[%s3 + $0x18] sm:$0xff]
  %v431 = vld [vmem:[%s3 + $0x20] sm:$0xff]
  %v432 = vld [vmem:[%s3 + $0x28] sm:$0xff]
  %v433 = vld [vmem:[%s3 + $0x30] sm:$0xff]
  %v434 = vld [vmem:[%s3 + $0x38] sm:$0xff]
  %v435 = vld [vmem:[%s4] sm:$0x1]
  %v437 = vlaneseq
  %v438 = vshrl.u32 %v437, 7
  %v439 = vsub.s32 0, %v438
  %v440 = vrot.slane %v435, %v439
  %vm442 = vcmask 523264
  %v444 = vsel %vm442, %v395, 0
  %v447 = vsel %vm442, %v396, 0
  %v450 = vsel %vm442, %v397, 0
  %v453 = vsel %vm442, %v398, 0
  %v456 = vsel %vm442, %v399, 0
  %v459 = vsel %vm442, %v400, 0
  %v462 = vsel %vm442, %v401, 0
  %v465 = vsel %vm442, %v402, 0
  %v468 = vsel %vm442, %v403, 0
  %v471 = vsel %vm442, %v404, 0
  %v474 = vsel %vm442, %v405, 0
  %v477 = vsel %vm442, %v406, 0
  %v480 = vsel %vm442, %v407, 0
  %v483 = vsel %vm442, %v408, 0
  %v486 = vsel %vm442, %v409, 0
  %v489 = vsel %vm442, %v410, 0
  %v492 = vsel %vm442, %v411, 0
  %v495 = vsel %vm442, %v412, 0
  %v498 = vsel %vm442, %v413, 0
  %v501 = vsel %vm442, %v414, 0
  %v504 = vsel %vm442, %v415, 0
  %v507 = vsel %vm442, %v416, 0
  %v510 = vsel %vm442, %v417, 0
  %v513 = vsel %vm442, %v418, 0
  %v516 = vsel %vm442, %v419, 0
  %v519 = vsel %vm442, %v420, 0
  %v522 = vsel %vm442, %v421, 0
  %v525 = vsel %vm442, %v422, 0
  %v528 = vsel %vm442, %v423, 0
  %v531 = vsel %vm442, %v424, 0
  %v534 = vsel %vm442, %v425, 0
  %v537 = vsel %vm442, %v426, 0
  %539 = vmatprep.subr.mxu0 0.0
  %540 = vmatpush1.msra.mxu0 0.0
  %541 = vmatprep.subr.mxu0 0.0
  %542 = vmatpush1.msra.mxu0 0.0
  %543 = vmatprep.subr.mxu0 0.0
  %544 = vmatpush1.msra.mxu0 0.0
  %545 = vmatprep.subr.mxu0 0.0
  %546 = vmatpush1.msra.mxu0 0.0
  %547 = vmatprep.subr.mxu0 0.0
  %548 = vmatpush1.msra.mxu0 0.0
  %549 = vmatprep.subr.mxu0 0.0
  %550 = vmatpush1.msra.mxu0 0.0
  %551 = vmatprep.subr.mxu0 0.0
  %552 = vmatpush1.msra.mxu0 0.0
  %553 = vmatprep.subr.mxu0 0.0
  %554 = vmatpush1.msra.mxu0 0.0
  %555 = vmatprep.subr.mxu0 0.0
  %556 = vmatpush1.msra.mxu0 %v434
  %557 = vmatprep.subr.mxu0 0.0
  %558 = vmatpush1.msra.mxu0 %v433
  %559 = vmatprep.subr.mxu0 0.0
  %560 = vmatpush1.msra.mxu0 %v432
  %561 = vmatprep.subr.mxu0 0.0
  %562 = vmatpush1.msra.mxu0 %v431
  %563 = vmatprep.subr.mxu0 0.0
  %564 = vmatpush1.msra.mxu0 %v430
  %565 = vmatprep.subr.mxu0 0.0
  %566 = vmatpush1.msra.mxu0 %v429
  %567 = vmatprep.subr.mxu0 0.0
  %568 = vmatpush1.msra.mxu0 %v428
  %569 = vmatprep.subr.mxu0 0.0
  %570 = vmatpush1.msra.mxu0 %v427
  %571 = vmatprep.subr.mxu0 0.0
  %572 = vmatpush2.msra.mxu0 0.0
  %573 = vmatprep.subr.mxu0 0.0
  %574 = vmatpush2.msra.mxu0 0.0
  %575 = vmatprep.subr.mxu0 0.0
  %576 = vmatpush2.msra.mxu0 0.0
  %577 = vmatprep.subr.mxu0 0.0
  %578 = vmatpush2.msra.mxu0 0.0
  %579 = vmatprep.subr.mxu0 0.0
  %580 = vmatpush2.msra.mxu0 0.0
  %581 = vmatprep.subr.mxu0 0.0
  %582 = vmatpush2.msra.mxu0 0.0
  %583 = vmatprep.subr.mxu0 0.0
  %584 = vmatpush2.msra.mxu0 0.0
  %585 = vmatprep.subr.mxu0 0.0
  %586 = vmatpush2.msra.mxu0 0.0
  %587 = vmatprep.subr.mxu0 0.0
  %588 = vmatpush2.msra.mxu0 0.0
  %589 = vmatprep.subr.mxu0 0.0
  %590 = vmatpush2.msra.mxu0 0.0
  %591 = vmatprep.subr.mxu0 0.0
  %592 = vmatpush2.msra.mxu0 0.0
  %593 = vmatprep.subr.mxu0 0.0
  %594 = vmatpush2.msra.mxu0 0.0
  %595 = vmatprep.subr.mxu0 0.0
  %596 = vmatpush2.msra.mxu0 0.0
  %597 = vmatprep.subr.mxu0 0.0
  %598 = vmatpush2.msra.mxu0 0.0
  %599 = vmatprep.subr.mxu0 0.0
  %600 = vmatpush2.msra.mxu0 0.0
  %601 = vmatprep.subr.mxu0 0.0
  %602 = vmatpush2.msra.mxu0 0.0
  %603 = vmatprep.mubr.f32.mxu0 0.0
  %604 = vmatmul.mubr.f32.gmra.mxu0 %v444
  %v605 = vpop.f32.mrf.mxu0
  %v606 = vadd.f32 %v440, %v605
  %v607 = vpop.f32.mrf.mxu0
  %608 = vmatprep.mubr.f32.mxu0 0.0
  %609 = vmatmul.mubr.f32.gmra.mxu0 %v447
  %v610 = vpop.f32.mrf.mxu0
  %v611 = vadd.f32 %v440, %v610
  %v612 = vpop.f32.mrf.mxu0
  %613 = vmatprep.mubr.f32.mxu0 0.0
  %614 = vmatmul.mubr.f32.gmra.mxu0 %v450
  %v615 = vpop.f32.mrf.mxu0
  %v616 = vadd.f32 %v440, %v615
  %v617 = vpop.f32.mrf.mxu0
  %618 = vmatprep.mubr.f32.mxu0 0.0
  %619 = vmatmul.mubr.f32.gmra.mxu0 %v453
  %v620 = vpop.f32.mrf.mxu0
  %v621 = vadd.f32 %v440, %v620
  %v622 = vpop.f32.mrf.mxu0
  %623 = vmatprep.mubr.f32.mxu0 0.0
  %624 = vmatmul.mubr.f32.gmra.mxu0 %v456
  %v625 = vpop.f32.mrf.mxu0
  %v626 = vadd.f32 %v440, %v625
  %v627 = vpop.f32.mrf.mxu0
  %628 = vmatprep.mubr.f32.mxu0 0.0
  %629 = vmatmul.mubr.f32.gmra.mxu0 %v459
  %v630 = vpop.f32.mrf.mxu0
  %v631 = vadd.f32 %v440, %v630
  %v632 = vpop.f32.mrf.mxu0
  %633 = vmatprep.mubr.f32.mxu0 0.0
  %634 = vmatmul.mubr.f32.gmra.mxu0 %v462
  %v635 = vpop.f32.mrf.mxu0
  %v636 = vadd.f32 %v440, %v635
  %v637 = vpop.f32.mrf.mxu0
  %638 = vmatprep.mubr.f32.mxu0 0.0
  %639 = vmatmul.mubr.f32.gmra.mxu0 %v465
  %v640 = vpop.f32.mrf.mxu0
  %v641 = vadd.f32 %v440, %v640
  %v642 = vpop.f32.mrf.mxu0
  %643 = vmatprep.mubr.f32.mxu0 0.0
  %644 = vmatmul.mubr.f32.gmra.mxu0 %v468
  %v645 = vpop.f32.mrf.mxu0
  %v646 = vadd.f32 %v440, %v645
  %v647 = vpop.f32.mrf.mxu0
  %648 = vmatprep.mubr.f32.mxu0 0.0
  %649 = vmatmul.mubr.f32.gmra.mxu0 %v471
  %v650 = vpop.f32.mrf.mxu0
  %v651 = vadd.f32 %v440, %v650
  %v652 = vpop.f32.mrf.mxu0
  %653 = vmatprep.mubr.f32.mxu0 0.0
  %654 = vmatmul.mubr.f32.gmra.mxu0 %v474
  %v655 = vpop.f32.mrf.mxu0
  %v656 = vadd.f32 %v440, %v655
  %v657 = vpop.f32.mrf.mxu0
  %658 = vmatprep.mubr.f32.mxu0 0.0
  %659 = vmatmul.mubr.f32.gmra.mxu0 %v477
  %v660 = vpop.f32.mrf.mxu0
  %v661 = vadd.f32 %v440, %v660
  %v662 = vpop.f32.mrf.mxu0
  %663 = vmatprep.mubr.f32.mxu0 0.0
  %664 = vmatmul.mubr.f32.gmra.mxu0 %v480
  %v665 = vpop.f32.mrf.mxu0
  %v666 = vadd.f32 %v440, %v665
  %v667 = vpop.f32.mrf.mxu0
  %668 = vmatprep.mubr.f32.mxu0 0.0
  %669 = vmatmul.mubr.f32.gmra.mxu0 %v483
  %v670 = vpop.f32.mrf.mxu0
  %v671 = vadd.f32 %v440, %v670
  %v672 = vpop.f32.mrf.mxu0
  %673 = vmatprep.mubr.f32.mxu0 0.0
  %674 = vmatmul.mubr.f32.gmra.mxu0 %v486
  %v675 = vpop.f32.mrf.mxu0
  %v676 = vadd.f32 %v440, %v675
  %v677 = vpop.f32.mrf.mxu0
  %678 = vmatprep.mubr.f32.mxu0 0.0
  %679 = vmatmul.mubr.f32.gmra.mxu0 %v489
  %v680 = vpop.f32.mrf.mxu0
  %v681 = vadd.f32 %v440, %v680
  %v682 = vpop.f32.mrf.mxu0
  %683 = vmatprep.mubr.f32.mxu0 0.0
  %684 = vmatmul.mubr.f32.gmra.mxu0 %v492
  %v685 = vpop.f32.mrf.mxu0
  %v686 = vadd.f32 %v440, %v685
  %v687 = vpop.f32.mrf.mxu0
  %688 = vmatprep.mubr.f32.mxu0 0.0
  %689 = vmatmul.mubr.f32.gmra.mxu0 %v495
  %v690 = vpop.f32.mrf.mxu0
  %v691 = vadd.f32 %v440, %v690
  %v692 = vpop.f32.mrf.mxu0
  %693 = vmatprep.mubr.f32.mxu0 0.0
  %694 = vmatmul.mubr.f32.gmra.mxu0 %v498
  %v695 = vpop.f32.mrf.mxu0
  %v696 = vadd.f32 %v440, %v695
  %v697 = vpop.f32.mrf.mxu0
  %698 = vmatprep.mubr.f32.mxu0 0.0
  %699 = vmatmul.mubr.f32.gmra.mxu0 %v501
  %v700 = vpop.f32.mrf.mxu0
  %v701 = vadd.f32 %v440, %v700
  %v702 = vpop.f32.mrf.mxu0
  %703 = vmatprep.mubr.f32.mxu0 0.0
  %704 = vmatmul.mubr.f32.gmra.mxu0 %v504
  %v705 = vpop.f32.mrf.mxu0
  %v706 = vadd.f32 %v440, %v705
  %v707 = vpop.f32.mrf.mxu0
  %708 = vmatprep.mubr.f32.mxu0 0.0
  %709 = vmatmul.mubr.f32.gmra.mxu0 %v507
  %v710 = vpop.f32.mrf.mxu0
  %v711 = vadd.f32 %v440, %v710
  %v712 = vpop.f32.mrf.mxu0
  %713 = vmatprep.mubr.f32.mxu0 0.0
  %714 = vmatmul.mubr.f32.gmra.mxu0 %v510
  %v715 = vpop.f32.mrf.mxu0
  %v716 = vadd.f32 %v440, %v715
  %v717 = vpop.f32.mrf.mxu0
  %718 = vmatprep.mubr.f32.mxu0 0.0
  %719 = vmatmul.mubr.f32.gmra.mxu0 %v513
  %v720 = vpop.f32.mrf.mxu0
  %v721 = vadd.f32 %v440, %v720
  %v722 = vpop.f32.mrf.mxu0
  %723 = vmatprep.mubr.f32.mxu0 0.0
  %724 = vmatmul.mubr.f32.gmra.mxu0 %v516
  %v725 = vpop.f32.mrf.mxu0
  %v726 = vadd.f32 %v440, %v725
  %v727 = vpop.f32.mrf.mxu0
  %728 = vmatprep.mubr.f32.mxu0 0.0
  %729 = vmatmul.mubr.f32.gmra.mxu0 %v519
  %v730 = vpop.f32.mrf.mxu0
  %v731 = vadd.f32 %v440, %v730
  %v732 = vpop.f32.mrf.mxu0
  %733 = vmatprep.mubr.f32.mxu0 0.0
  %734 = vmatmul.mubr.f32.gmra.mxu0 %v522
  %v735 = vpop.f32.mrf.mxu0
  %v736 = vadd.f32 %v440, %v735
  %v737 = vpop.f32.mrf.mxu0
  %738 = vmatprep.mubr.f32.mxu0 0.0
  %739 = vmatmul.mubr.f32.gmra.mxu0 %v525
  %v740 = vpop.f32.mrf.mxu0
  %v741 = vadd.f32 %v440, %v740
  %v742 = vpop.f32.mrf.mxu0
  %743 = vmatprep.mubr.f32.mxu0 0.0
  %744 = vmatmul.mubr.f32.gmra.mxu0 %v528
  %v745 = vpop.f32.mrf.mxu0
  %v746 = vadd.f32 %v440, %v745
  %v747 = vpop.f32.mrf.mxu0
  %748 = vmatprep.mubr.f32.mxu0 0.0
  %749 = vmatmul.mubr.f32.gmra.mxu0 %v531
  %v750 = vpop.f32.mrf.mxu0
  %v751 = vadd.f32 %v440, %v750
  %v752 = vpop.f32.mrf.mxu0
  %753 = vmatprep.mubr.f32.mxu0 0.0
  %754 = vmatmul.mubr.f32.gmra.mxu0 %v534
  %v755 = vpop.f32.mrf.mxu0
  %v756 = vadd.f32 %v440, %v755
  %v757 = vpop.f32.mrf.mxu0
  %758 = vmatprep.mubr.f32.mxu0 0.0
  %759 = vmatmul.mubr.f32.gmra.mxu0 %v537
  %v760 = vpop.f32.mrf.mxu0
  %v761 = vadd.f32 %v440, %v760
  %v762 = vpop.f32.mrf.mxu0
  %763 = vdwg.mxu0
  %v764 = vmax.f32 %v606, 0.0
  %v765 = vmax.f32 %v611, 0.0
  %v766 = vmax.f32 %v616, 0.0
  %v767 = vmax.f32 %v621, 0.0
  %v768 = vmax.f32 %v626, 0.0
  %v769 = vmax.f32 %v631, 0.0
  %v770 = vmax.f32 %v636, 0.0
  %v771 = vmax.f32 %v641, 0.0
  %v772 = vmax.f32 %v646, 0.0
  %v773 = vmax.f32 %v651, 0.0
  %v774 = vmax.f32 %v656, 0.0
  %v775 = vmax.f32 %v661, 0.0
  %v776 = vmax.f32 %v666, 0.0
  %v777 = vmax.f32 %v671, 0.0
  %v778 = vmax.f32 %v676, 0.0
  %v779 = vmax.f32 %v681, 0.0
  %v780 = vmax.f32 %v686, 0.0
  %v781 = vmax.f32 %v691, 0.0
  %v782 = vmax.f32 %v696, 0.0
  %v783 = vmax.f32 %v701, 0.0
  %v784 = vmax.f32 %v706, 0.0
  %v785 = vmax.f32 %v711, 0.0
  %v786 = vmax.f32 %v716, 0.0
  %v787 = vmax.f32 %v721, 0.0
  %v788 = vmax.f32 %v726, 0.0
  %v789 = vmax.f32 %v731, 0.0
  %v790 = vmax.f32 %v736, 0.0
  %v791 = vmax.f32 %v741, 0.0
  %v792 = vmax.f32 %v746, 0.0
  %v793 = vmax.f32 %v751, 0.0
  %v794 = vmax.f32 %v756, 0.0
  %v795 = vmax.f32 %v761, 0.0
  %v796 = vld [vmem:[%s5] sm:$0xff]
  %v797 = vld [vmem:[%s5 + $0x8] sm:$0xff]
  %v798 = vld [vmem:[%s5 + $0x10] sm:$0xff]
  %v799 = vld [vmem:[%s5 + $0x18] sm:$0xff]
  %v800 = vld [vmem:[%s5 + $0x20] sm:$0xff]
  %v801 = vld [vmem:[%s5 + $0x28] sm:$0xff]
  %v802 = vld [vmem:[%s5 + $0x30] sm:$0xff]
  %v803 = vld [vmem:[%s5 + $0x38] sm:$0xff]
  %v804 = vld [vmem:[%s5 + $0x40] sm:$0xff]
  %v805 = vld [vmem:[%s5 + $0x48] sm:$0xff]
  %v806 = vld [vmem:[%s5 + $0x50] sm:$0xff]
  %v807 = vld [vmem:[%s5 + $0x58] sm:$0xff]
  %v808 = vld [vmem:[%s5 + $0x60] sm:$0xff]
  %v809 = vld [vmem:[%s5 + $0x68] sm:$0xff]
  %v810 = vld [vmem:[%s5 + $0x70] sm:$0xff]
  %v811 = vld [vmem:[%s5 + $0x78] sm:$0xff]
  %v812 = vld [vmem:[%s6] sm:$0x3]
  %v814 = vlaneseq
  %v815 = vshrl.u32 %v814, 7
  %v816 = vsub.s32 0, %v815
  %v817 = vrot.slane %v812, %v816
  %v818 = vlaneseq
  %v819 = vshrl.u32 %v818, 7
  %v820 = vsub.s32 1, %v819
  %v821 = vrot.slane %v812, %v820
  %v825 = vsel %vm442, %v764, 0
  %v828 = vsel %vm442, %v765, 0
  %v831 = vsel %vm442, %v766, 0
  %v834 = vsel %vm442, %v767, 0
  %v837 = vsel %vm442, %v768, 0
  %v840 = vsel %vm442, %v769, 0
  %v843 = vsel %vm442, %v770, 0
  %v846 = vsel %vm442, %v771, 0
  %v849 = vsel %vm442, %v772, 0
  %v852 = vsel %vm442, %v773, 0
  %v855 = vsel %vm442, %v774, 0
  %v858 = vsel %vm442, %v775, 0
  %v861 = vsel %vm442, %v776, 0
  %v864 = vsel %vm442, %v777, 0
  %v867 = vsel %vm442, %v778, 0
  %v870 = vsel %vm442, %v779, 0
  %v873 = vsel %vm442, %v780, 0
  %v876 = vsel %vm442, %v781, 0
  %v879 = vsel %vm442, %v782, 0
  %v882 = vsel %vm442, %v783, 0
  %v885 = vsel %vm442, %v784, 0
  %v888 = vsel %vm442, %v785, 0
  %v891 = vsel %vm442, %v786, 0
  %v894 = vsel %vm442, %v787, 0
  %v897 = vsel %vm442, %v788, 0
  %v900 = vsel %vm442, %v789, 0
  %v903 = vsel %vm442, %v790, 0
  %v906 = vsel %vm442, %v791, 0
  %v909 = vsel %vm442, %v792, 0
  %v912 = vsel %vm442, %v793, 0
  %v915 = vsel %vm442, %v794, 0
  %v918 = vsel %vm442, %v795, 0
  %920 = vmatprep.subr.mxu0 0.0
  %921 = vmatpush1.msra.mxu0 0.0
  %922 = vmatprep.subr.mxu0 0.0
  %923 = vmatpush1.msra.mxu0 0.0
  %924 = vmatprep.subr.mxu0 0.0
  %925 = vmatpush1.msra.mxu0 0.0
  %926 = vmatprep.subr.mxu0 0.0
  %927 = vmatpush1.msra.mxu0 0.0
  %928 = vmatprep.subr.mxu0 0.0
  %929 = vmatpush1.msra.mxu0 0.0
  %930 = vmatprep.subr.mxu0 0.0
  %931 = vmatpush1.msra.mxu0 0.0
  %932 = vmatprep.subr.mxu0 0.0
  %933 = vmatpush1.msra.mxu0 0.0
  %934 = vmatprep.subr.mxu0 0.0
  %935 = vmatpush1.msra.mxu0 0.0
  %936 = vmatprep.subr.mxu0 %v811
  %937 = vmatpush1.msra.mxu0 %v810
  %938 = vmatprep.subr.mxu0 %v809
  %939 = vmatpush1.msra.mxu0 %v808
  %940 = vmatprep.subr.mxu0 %v807
  %941 = vmatpush1.msra.mxu0 %v806
  %942 = vmatprep.subr.mxu0 %v805
  %943 = vmatpush1.msra.mxu0 %v804
  %944 = vmatprep.subr.mxu0 %v803
  %945 = vmatpush1.msra.mxu0 %v802
  %946 = vmatprep.subr.mxu0 %v801
  %947 = vmatpush1.msra.mxu0 %v800
  %948 = vmatprep.subr.mxu0 %v799
  %949 = vmatpush1.msra.mxu0 %v798
  %950 = vmatprep.subr.mxu0 %v797
  %951 = vmatpush1.msra.mxu0 %v796
  %952 = vmatprep.subr.mxu0 0.0
  %953 = vmatpush2.msra.mxu0 0.0
  %954 = vmatprep.subr.mxu0 0.0
  %955 = vmatpush2.msra.mxu0 0.0
  %956 = vmatprep.subr.mxu0 0.0
  %957 = vmatpush2.msra.mxu0 0.0
  %958 = vmatprep.subr.mxu0 0.0
  %959 = vmatpush2.msra.mxu0 0.0
  %960 = vmatprep.subr.mxu0 0.0
  %961 = vmatpush2.msra.mxu0 0.0
  %962 = vmatprep.subr.mxu0 0.0
  %963 = vmatpush2.msra.mxu0 0.0
  %964 = vmatprep.subr.mxu0 0.0
  %965 = vmatpush2.msra.mxu0 0.0
  %966 = vmatprep.subr.mxu0 0.0
  %967 = vmatpush2.msra.mxu0 0.0
  %968 = vmatprep.subr.mxu0 0.0
  %969 = vmatpush2.msra.mxu0 0.0
  %970 = vmatprep.subr.mxu0 0.0
  %971 = vmatpush2.msra.mxu0 0.0
  %972 = vmatprep.subr.mxu0 0.0
  %973 = vmatpush2.msra.mxu0 0.0
  %974 = vmatprep.subr.mxu0 0.0
  %975 = vmatpush2.msra.mxu0 0.0
  %976 = vmatprep.subr.mxu0 0.0
  %977 = vmatpush2.msra.mxu0 0.0
  %978 = vmatprep.subr.mxu0 0.0
  %979 = vmatpush2.msra.mxu0 0.0
  %980 = vmatprep.subr.mxu0 0.0
  %981 = vmatpush2.msra.mxu0 0.0
  %982 = vmatprep.subr.mxu0 0.0
  %983 = vmatpush2.msra.mxu0 0.0
  %984 = vmatprep.mubr.f32.mxu0 0.0
  %985 = vmatmul.mubr.f32.gmra.mxu0 %v825
  %v986 = vpop.f32.mrf.mxu0
  %v987 = vadd.f32 %v817, %v986
  %v988 = vpop.f32.mrf.mxu0
  %v989 = vadd.f32 %v821, %v988
  %990 = vmatprep.mubr.f32.mxu0 0.0
  %991 = vmatmul.mubr.f32.gmra.mxu0 %v828
  %v992 = vpop.f32.mrf.mxu0
  %v993 = vadd.f32 %v817, %v992
  %v994 = vpop.f32.mrf.mxu0
  %v995 = vadd.f32 %v821, %v994
  %996 = vmatprep.mubr.f32.mxu0 0.0
  %997 = vmatmul.mubr.f32.gmra.mxu0 %v831
  %v998 = vpop.f32.mrf.mxu0
  %v999 = vadd.f32 %v817, %v998
  %v1000 = vpop.f32.mrf.mxu0
  %v1001 = vadd.f32 %v821, %v1000
  %1002 = vmatprep.mubr.f32.mxu0 0.0
  %1003 = vmatmul.mubr.f32.gmra.mxu0 %v834
  %v1004 = vpop.f32.mrf.mxu0
  %v1005 = vadd.f32 %v817, %v1004
  %v1006 = vpop.f32.mrf.mxu0
  %v1007 = vadd.f32 %v821, %v1006
  %1008 = vmatprep.mubr.f32.mxu0 0.0
  %1009 = vmatmul.mubr.f32.gmra.mxu0 %v837
  %v1010 = vpop.f32.mrf.mxu0
  %v1011 = vadd.f32 %v817, %v1010
  %v1012 = vpop.f32.mrf.mxu0
  %v1013 = vadd.f32 %v821, %v1012
  %1014 = vmatprep.mubr.f32.mxu0 0.0
  %1015 = vmatmul.mubr.f32.gmra.mxu0 %v840
  %v1016 = vpop.f32.mrf.mxu0
  %v1017 = vadd.f32 %v817, %v1016
  %v1018 = vpop.f32.mrf.mxu0
  %v1019 = vadd.f32 %v821, %v1018
  %1020 = vmatprep.mubr.f32.mxu0 0.0
  %1021 = vmatmul.mubr.f32.gmra.mxu0 %v843
  %v1022 = vpop.f32.mrf.mxu0
  %v1023 = vadd.f32 %v817, %v1022
  %v1024 = vpop.f32.mrf.mxu0
  %v1025 = vadd.f32 %v821, %v1024
  %1026 = vmatprep.mubr.f32.mxu0 0.0
  %1027 = vmatmul.mubr.f32.gmra.mxu0 %v846
  %v1028 = vpop.f32.mrf.mxu0
  %v1029 = vadd.f32 %v817, %v1028
  %v1030 = vpop.f32.mrf.mxu0
  %v1031 = vadd.f32 %v821, %v1030
  %1032 = vmatprep.mubr.f32.mxu0 0.0
  %1033 = vmatmul.mubr.f32.gmra.mxu0 %v849
  %v1034 = vpop.f32.mrf.mxu0
  %v1035 = vadd.f32 %v817, %v1034
  %v1036 = vpop.f32.mrf.mxu0
  %v1037 = vadd.f32 %v821, %v1036
  %1038 = vmatprep.mubr.f32.mxu0 0.0
  %1039 = vmatmul.mubr.f32.gmra.mxu0 %v852
  %v1040 = vpop.f32.mrf.mxu0
  %v1041 = vadd.f32 %v817, %v1040
  %v1042 = vpop.f32.mrf.mxu0
  %v1043 = vadd.f32 %v821, %v1042
  %1044 = vmatprep.mubr.f32.mxu0 0.0
  %1045 = vmatmul.mubr.f32.gmra.mxu0 %v855
  %v1046 = vpop.f32.mrf.mxu0
  %v1047 = vadd.f32 %v817, %v1046
  %v1048 = vpop.f32.mrf.mxu0
  %v1049 = vadd.f32 %v821, %v1048
  %1050 = vmatprep.mubr.f32.mxu0 0.0
  %1051 = vmatmul.mubr.f32.gmra.mxu0 %v858
  %v1052 = vpop.f32.mrf.mxu0
  %v1053 = vadd.f32 %v817, %v1052
  %v1054 = vpop.f32.mrf.mxu0
  %v1055 = vadd.f32 %v821, %v1054
  %1056 = vmatprep.mubr.f32.mxu0 0.0
  %1057 = vmatmul.mubr.f32.gmra.mxu0 %v861
  %v1058 = vpop.f32.mrf.mxu0
  %v1059 = vadd.f32 %v817, %v1058
  %v1060 = vpop.f32.mrf.mxu0
  %v1061 = vadd.f32 %v821, %v1060
  %1062 = vmatprep.mubr.f32.mxu0 0.0
  %1063 = vmatmul.mubr.f32.gmra.mxu0 %v864
  %v1064 = vpop.f32.mrf.mxu0
  %v1065 = vadd.f32 %v817, %v1064
  %v1066 = vpop.f32.mrf.mxu0
  %v1067 = vadd.f32 %v821, %v1066
  %1068 = vmatprep.mubr.f32.mxu0 0.0
  %1069 = vmatmul.mubr.f32.gmra.mxu0 %v867
  %v1070 = vpop.f32.mrf.mxu0
  %v1071 = vadd.f32 %v817, %v1070
  %v1072 = vpop.f32.mrf.mxu0
  %v1073 = vadd.f32 %v821, %v1072
  %1074 = vmatprep.mubr.f32.mxu0 0.0
  %1075 = vmatmul.mubr.f32.gmra.mxu0 %v870
  %v1076 = vpop.f32.mrf.mxu0
  %v1077 = vadd.f32 %v817, %v1076
  %v1078 = vpop.f32.mrf.mxu0
  %v1079 = vadd.f32 %v821, %v1078
  %1080 = vmatprep.mubr.f32.mxu0 0.0
  %1081 = vmatmul.mubr.f32.gmra.mxu0 %v873
  %v1082 = vpop.f32.mrf.mxu0
  %v1083 = vadd.f32 %v817, %v1082
  %v1084 = vpop.f32.mrf.mxu0
  %v1085 = vadd.f32 %v821, %v1084
  %1086 = vmatprep.mubr.f32.mxu0 0.0
  %1087 = vmatmul.mubr.f32.gmra.mxu0 %v876
  %v1088 = vpop.f32.mrf.mxu0
  %v1089 = vadd.f32 %v817, %v1088
  %v1090 = vpop.f32.mrf.mxu0
  %v1091 = vadd.f32 %v821, %v1090
  %1092 = vmatprep.mubr.f32.mxu0 0.0
  %1093 = vmatmul.mubr.f32.gmra.mxu0 %v879
  %v1094 = vpop.f32.mrf.mxu0
  %v1095 = vadd.f32 %v817, %v1094
  %v1096 = vpop.f32.mrf.mxu0
  %v1097 = vadd.f32 %v821, %v1096
  %1098 = vmatprep.mubr.f32.mxu0 0.0
  %1099 = vmatmul.mubr.f32.gmra.mxu0 %v882
  %v1100 = vpop.f32.mrf.mxu0
  %v1101 = vadd.f32 %v817, %v1100
  %v1102 = vpop.f32.mrf.mxu0
  %v1103 = vadd.f32 %v821, %v1102
  %1104 = vmatprep.mubr.f32.mxu0 0.0
  %1105 = vmatmul.mubr.f32.gmra.mxu0 %v885
  %v1106 = vpop.f32.mrf.mxu0
  %v1107 = vadd.f32 %v817, %v1106
  %v1108 = vpop.f32.mrf.mxu0
  %v1109 = vadd.f32 %v821, %v1108
  %1110 = vmatprep.mubr.f32.mxu0 0.0
  %1111 = vmatmul.mubr.f32.gmra.mxu0 %v888
  %v1112 = vpop.f32.mrf.mxu0
  %v1113 = vadd.f32 %v817, %v1112
  %v1114 = vpop.f32.mrf.mxu0
  %v1115 = vadd.f32 %v821, %v1114
  %1116 = vmatprep.mubr.f32.mxu0 0.0
  %1117 = vmatmul.mubr.f32.gmra.mxu0 %v891
  %v1118 = vpop.f32.mrf.mxu0
  %v1119 = vadd.f32 %v817, %v1118
  %v1120 = vpop.f32.mrf.mxu0
  %v1121 = vadd.f32 %v821, %v1120
  %1122 = vmatprep.mubr.f32.mxu0 0.0
  %1123 = vmatmul.mubr.f32.gmra.mxu0 %v894
  %v1124 = vpop.f32.mrf.mxu0
  %v1125 = vadd.f32 %v817, %v1124
  %v1126 = vpop.f32.mrf.mxu0
  %v1127 = vadd.f32 %v821, %v1126
  %1128 = vmatprep.mubr.f32.mxu0 0.0
  %1129 = vmatmul.mubr.f32.gmra.mxu0 %v897
  %v1130 = vpop.f32.mrf.mxu0
  %v1131 = vadd.f32 %v817, %v1130
  %v1132 = vpop.f32.mrf.mxu0
  %v1133 = vadd.f32 %v821, %v1132
  %1134 = vmatprep.mubr.f32.mxu0 0.0
  %1135 = vmatmul.mubr.f32.gmra.mxu0 %v900
  %v1136 = vpop.f32.mrf.mxu0
  %v1137 = vadd.f32 %v817, %v1136
  %v1138 = vpop.f32.mrf.mxu0
  %v1139 = vadd.f32 %v821, %v1138
  %1140 = vmatprep.mubr.f32.mxu0 0.0
  %1141 = vmatmul.mubr.f32.gmra.mxu0 %v903
  %v1142 = vpop.f32.mrf.mxu0
  %v1143 = vadd.f32 %v817, %v1142
  %v1144 = vpop.f32.mrf.mxu0
  %v1145 = vadd.f32 %v821, %v1144
  %1146 = vmatprep.mubr.f32.mxu0 0.0
  %1147 = vmatmul.mubr.f32.gmra.mxu0 %v906
  %v1148 = vpop.f32.mrf.mxu0
  %v1149 = vadd.f32 %v817, %v1148
  %v1150 = vpop.f32.mrf.mxu0
  %v1151 = vadd.f32 %v821, %v1150
  %1152 = vmatprep.mubr.f32.mxu0 0.0
  %1153 = vmatmul.mubr.f32.gmra.mxu0 %v909
  %v1154 = vpop.f32.mrf.mxu0
  %v1155 = vadd.f32 %v817, %v1154
  %v1156 = vpop.f32.mrf.mxu0
  %v1157 = vadd.f32 %v821, %v1156
  %1158 = vmatprep.mubr.f32.mxu0 0.0
  %1159 = vmatmul.mubr.f32.gmra.mxu0 %v912
  %v1160 = vpop.f32.mrf.mxu0
  %v1161 = vadd.f32 %v817, %v1160
  %v1162 = vpop.f32.mrf.mxu0
  %v1163 = vadd.f32 %v821, %v1162
  %1164 = vmatprep.mubr.f32.mxu0 0.0
  %1165 = vmatmul.mubr.f32.gmra.mxu0 %v915
  %v1166 = vpop.f32.mrf.mxu0
  %v1167 = vadd.f32 %v817, %v1166
  %v1168 = vpop.f32.mrf.mxu0
  %v1169 = vadd.f32 %v821, %v1168
  %1170 = vmatprep.mubr.f32.mxu0 0.0
  %1171 = vmatmul.mubr.f32.gmra.mxu0 %v918
  %v1172 = vpop.f32.mrf.mxu0
  %v1173 = vadd.f32 %v817, %v1172
  %v1174 = vpop.f32.mrf.mxu0
  %v1175 = vadd.f32 %v821, %v1174
  %1176 = vdwg.mxu0
  %v1177 = vmax.f32 %v987, 0.0
  %v1178 = vmax.f32 %v989, 0.0
  %v1179 = vmax.f32 %v993, 0.0
  %v1180 = vmax.f32 %v995, 0.0
  %v1181 = vmax.f32 %v999, 0.0
  %v1182 = vmax.f32 %v1001, 0.0
  %v1183 = vmax.f32 %v1005, 0.0
  %v1184 = vmax.f32 %v1007, 0.0
  %v1185 = vmax.f32 %v1011, 0.0
  %v1186 = vmax.f32 %v1013, 0.0
  %v1187 = vmax.f32 %v1017, 0.0
  %v1188 = vmax.f32 %v1019, 0.0
  %v1189 = vmax.f32 %v1023, 0.0
  %v1190 = vmax.f32 %v1025, 0.0
  %v1191 = vmax.f32 %v1029, 0.0
  %v1192 = vmax.f32 %v1031, 0.0
  %v1193 = vmax.f32 %v1035, 0.0
  %v1194 = vmax.f32 %v1037, 0.0
  %v1195 = vmax.f32 %v1041, 0.0
  %v1196 = vmax.f32 %v1043, 0.0
  %v1197 = vmax.f32 %v1047, 0.0
  %v1198 = vmax.f32 %v1049, 0.0
  %v1199 = vmax.f32 %v1053, 0.0
  %v1200 = vmax.f32 %v1055, 0.0
  %v1201 = vmax.f32 %v1059, 0.0
  %v1202 = vmax.f32 %v1061, 0.0
  %v1203 = vmax.f32 %v1065, 0.0
  %v1204 = vmax.f32 %v1067, 0.0
  %v1205 = vmax.f32 %v1071, 0.0
  %v1206 = vmax.f32 %v1073, 0.0
  %v1207 = vmax.f32 %v1077, 0.0
  %v1208 = vmax.f32 %v1079, 0.0
  %v1209 = vmax.f32 %v1083, 0.0
  %v1210 = vmax.f32 %v1085, 0.0
  %v1211 = vmax.f32 %v1089, 0.0
  %v1212 = vmax.f32 %v1091, 0.0
  %v1213 = vmax.f32 %v1095, 0.0
  %v1214 = vmax.f32 %v1097, 0.0
  %v1215 = vmax.f32 %v1101, 0.0
  %v1216 = vmax.f32 %v1103, 0.0
  %v1217 = vmax.f32 %v1107, 0.0
  %v1218 = vmax.f32 %v1109, 0.0
  %v1219 = vmax.f32 %v1113, 0.0
  %v1220 = vmax.f32 %v1115, 0.0
  %v1221 = vmax.f32 %v1119, 0.0
  %v1222 = vmax.f32 %v1121, 0.0
  %v1223 = vmax.f32 %v1125, 0.0
  %v1224 = vmax.f32 %v1127, 0.0
  %v1225 = vmax.f32 %v1131, 0.0
  %v1226 = vmax.f32 %v1133, 0.0
  %v1227 = vmax.f32 %v1137, 0.0
  %v1228 = vmax.f32 %v1139, 0.0
  %v1229 = vmax.f32 %v1143, 0.0
  %v1230 = vmax.f32 %v1145, 0.0
  %v1231 = vmax.f32 %v1149, 0.0
  %v1232 = vmax.f32 %v1151, 0.0
  %v1233 = vmax.f32 %v1155, 0.0
  %v1234 = vmax.f32 %v1157, 0.0
  %v1235 = vmax.f32 %v1161, 0.0
  %v1236 = vmax.f32 %v1163, 0.0
  %v1237 = vmax.f32 %v1167, 0.0
  %v1238 = vmax.f32 %v1169, 0.0
  %v1239 = vmax.f32 %v1173, 0.0
  %v1240 = vmax.f32 %v1175, 0.0
  %v1241 = vld [vmem:[%s7] sm:$0xff]
  %v1242 = vld [vmem:[%s7 + $0x8] sm:$0xff]
  %v1243 = vld [vmem:[%s7 + $0x10] sm:$0xff]
  %v1244 = vld [vmem:[%s7 + $0x18] sm:$0xff]
  %v1245 = vld [vmem:[%s7 + $0x20] sm:$0xff]
  %v1246 = vld [vmem:[%s7 + $0x28] sm:$0xff]
  %v1247 = vld [vmem:[%s7 + $0x30] sm:$0xff]
  %v1248 = vld [vmem:[%s7 + $0x38] sm:$0xff]
  %v1249 = vld [vmem:[%s7 + $0x40] sm:$0xff]
  %v1250 = vld [vmem:[%s7 + $0x48] sm:$0xff]
  %v1251 = vld [vmem:[%s7 + $0x50] sm:$0xff]
  %v1252 = vld [vmem:[%s7 + $0x58] sm:$0xff]
  %v1253 = vld [vmem:[%s7 + $0x60] sm:$0xff]
  %v1254 = vld [vmem:[%s7 + $0x68] sm:$0xff]
  %v1255 = vld [vmem:[%s7 + $0x70] sm:$0xff]
  %v1256 = vld [vmem:[%s7 + $0x78] sm:$0xff]
  %v1257 = vld [vmem:[%s7 + $0x80] sm:$0xff]
  %v1258 = vld [vmem:[%s7 + $0x88] sm:$0xff]
  %v1259 = vld [vmem:[%s7 + $0x90] sm:$0xff]
  %v1260 = vld [vmem:[%s7 + $0x98] sm:$0xff]
  %v1261 = vld [vmem:[%s7 + $0xa0] sm:$0xff]
  %v1262 = vld [vmem:[%s7 + $0xa8] sm:$0xff]
  %v1263 = vld [vmem:[%s7 + $0xb0] sm:$0xff]
  %v1264 = vld [vmem:[%s7 + $0xb8] sm:$0xff]
  %v1265 = vld [vmem:[%s7 + $0xc0] sm:$0xff]
  %v1266 = vld [vmem:[%s7 + $0xc8] sm:$0xff]
  %v1267 = vld [vmem:[%s7 + $0xd0] sm:$0xff]
  %v1268 = vld [vmem:[%s7 + $0xd8] sm:$0xff]
  %v1269 = vld [vmem:[%s7 + $0xe0] sm:$0xff]
  %v1270 = vld [vmem:[%s7 + $0xe8] sm:$0xff]
  %v1271 = vld [vmem:[%s7 + $0xf0] sm:$0xff]
  %v1272 = vld [vmem:[%s7 + $0xf8] sm:$0xff]
  %v1273 = vld [vmem:[%s8] sm:$0x1]
  %v1275 = vlaneseq
  %v1276 = vshrl.u32 %v1275, 7
  %v1277 = vsub.s32 0, %v1276
  %v1278 = vrot.slane %v1273, %v1277
  %1280 = vmatprep.subr.mxu0 0.0
  %1281 = vmatpush1.msra.mxu0 %v1256
  %1282 = vmatprep.subr.mxu0 0.0
  %1283 = vmatpush1.msra.mxu0 %v1255
  %1284 = vmatprep.subr.mxu0 0.0
  %1285 = vmatpush1.msra.mxu0 %v1254
  %1286 = vmatprep.subr.mxu0 0.0
  %1287 = vmatpush1.msra.mxu0 %v1253
  %1288 = vmatprep.subr.mxu0 0.0
  %1289 = vmatpush1.msra.mxu0 %v1252
  %1290 = vmatprep.subr.mxu0 0.0
  %1291 = vmatpush1.msra.mxu0 %v1251
  %1292 = vmatprep.subr.mxu0 0.0
  %1293 = vmatpush1.msra.mxu0 %v1250
  %1294 = vmatprep.subr.mxu0 0.0
  %1295 = vmatpush1.msra.mxu0 %v1249
  %1296 = vmatprep.subr.mxu0 0.0
  %1297 = vmatpush1.msra.mxu0 %v1248
  %1298 = vmatprep.subr.mxu0 0.0
  %1299 = vmatpush1.msra.mxu0 %v1247
  %1300 = vmatprep.subr.mxu0 0.0
  %1301 = vmatpush1.msra.mxu0 %v1246
  %1302 = vmatprep.subr.mxu0 0.0
  %1303 = vmatpush1.msra.mxu0 %v1245
  %1304 = vmatprep.subr.mxu0 0.0
  %1305 = vmatpush1.msra.mxu0 %v1244
  %1306 = vmatprep.subr.mxu0 0.0
  %1307 = vmatpush1.msra.mxu0 %v1243
  %1308 = vmatprep.subr.mxu0 0.0
  %1309 = vmatpush1.msra.mxu0 %v1242
  %1310 = vmatprep.subr.mxu0 0.0
  %1311 = vmatpush1.msra.mxu0 %v1241
  %1312 = vmatprep.subr.mxu0 0.0
  %1313 = vmatpush2.msra.mxu0 %v1272
  %1314 = vmatprep.subr.mxu0 0.0
  %1315 = vmatpush2.msra.mxu0 %v1271
  %1316 = vmatprep.subr.mxu0 0.0
  %1317 = vmatpush2.msra.mxu0 %v1270
  %1318 = vmatprep.subr.mxu0 0.0
  %1319 = vmatpush2.msra.mxu0 %v1269
  %1320 = vmatprep.subr.mxu0 0.0
  %1321 = vmatpush2.msra.mxu0 %v1268
  %1322 = vmatprep.subr.mxu0 0.0
  %1323 = vmatpush2.msra.mxu0 %v1267
  %1324 = vmatprep.subr.mxu0 0.0
  %1325 = vmatpush2.msra.mxu0 %v1266
  %1326 = vmatprep.subr.mxu0 0.0
  %1327 = vmatpush2.msra.mxu0 %v1265
  %1328 = vmatprep.subr.mxu0 0.0
  %1329 = vmatpush2.msra.mxu0 %v1264
  %1330 = vmatprep.subr.mxu0 0.0
  %1331 = vmatpush2.msra.mxu0 %v1263
  %1332 = vmatprep.subr.mxu0 0.0
  %1333 = vmatpush2.msra.mxu0 %v1262
  %1334 = vmatprep.subr.mxu0 0.0
  %1335 = vmatpush2.msra.mxu0 %v1261
  %1336 = vmatprep.subr.mxu0 0.0
  %1337 = vmatpush2.msra.mxu0 %v1260
  %1338 = vmatprep.subr.mxu0 0.0
  %1339 = vmatpush2.msra.mxu0 %v1259
  %1340 = vmatprep.subr.mxu0 0.0
  %1341 = vmatpush2.msra.mxu0 %v1258
  %1342 = vmatprep.subr.mxu0 0.0
  %1343 = vmatpush2.msra.mxu0 %v1257
  %1344 = vmatprep.mubr.f32.mxu0 %v1178
  %1345 = vmatmul.mubr.f32.gmra.mxu0 %v1177
  %v1346 = vpop.f32.mrf.mxu0
  %v1347 = vadd.f32 %v1278, %v1346
  %v1348 = vpop.f32.mrf.mxu0
  %1349 = vmatprep.mubr.f32.mxu0 %v1180
  %1350 = vmatmul.mubr.f32.gmra.mxu0 %v1179
  %v1351 = vpop.f32.mrf.mxu0
  %v1352 = vadd.f32 %v1278, %v1351
  %v1353 = vpop.f32.mrf.mxu0
  %1354 = vmatprep.mubr.f32.mxu0 %v1182
  %1355 = vmatmul.mubr.f32.gmra.mxu0 %v1181
  %v1356 = vpop.f32.mrf.mxu0
  %v1357 = vadd.f32 %v1278, %v1356
  %v1358 = vpop.f32.mrf.mxu0
  %1359 = vmatprep.mubr.f32.mxu0 %v1184
  %1360 = vmatmul.mubr.f32.gmra.mxu0 %v1183
  %v1361 = vpop.f32.mrf.mxu0
  %v1362 = vadd.f32 %v1278, %v1361
  %v1363 = vpop.f32.mrf.mxu0
  %1364 = vmatprep.mubr.f32.mxu0 %v1186
  %1365 = vmatmul.mubr.f32.gmra.mxu0 %v1185
  %v1366 = vpop.f32.mrf.mxu0
  %v1367 = vadd.f32 %v1278, %v1366
  %v1368 = vpop.f32.mrf.mxu0
  %1369 = vmatprep.mubr.f32.mxu0 %v1188
  %1370 = vmatmul.mubr.f32.gmra.mxu0 %v1187
  %v1371 = vpop.f32.mrf.mxu0
  %v1372 = vadd.f32 %v1278, %v1371
  %v1373 = vpop.f32.mrf.mxu0
  %1374 = vmatprep.mubr.f32.mxu0 %v1190
  %1375 = vmatmul.mubr.f32.gmra.mxu0 %v1189
  %v1376 = vpop.f32.mrf.mxu0
  %v1377 = vadd.f32 %v1278, %v1376
  %v1378 = vpop.f32.mrf.mxu0
  %1379 = vmatprep.mubr.f32.mxu0 %v1192
  %1380 = vmatmul.mubr.f32.gmra.mxu0 %v1191
  %v1381 = vpop.f32.mrf.mxu0
  %v1382 = vadd.f32 %v1278, %v1381
  %v1383 = vpop.f32.mrf.mxu0
  %1384 = vmatprep.mubr.f32.mxu0 %v1194
  %1385 = vmatmul.mubr.f32.gmra.mxu0 %v1193
  %v1386 = vpop.f32.mrf.mxu0
  %v1387 = vadd.f32 %v1278, %v1386
  %v1388 = vpop.f32.mrf.mxu0
  %1389 = vmatprep.mubr.f32.mxu0 %v1196
  %1390 = vmatmul.mubr.f32.gmra.mxu0 %v1195
  %v1391 = vpop.f32.mrf.mxu0
  %v1392 = vadd.f32 %v1278, %v1391
  %v1393 = vpop.f32.mrf.mxu0
  %1394 = vmatprep.mubr.f32.mxu0 %v1198
  %1395 = vmatmul.mubr.f32.gmra.mxu0 %v1197
  %v1396 = vpop.f32.mrf.mxu0
  %v1397 = vadd.f32 %v1278, %v1396
  %v1398 = vpop.f32.mrf.mxu0
  %1399 = vmatprep.mubr.f32.mxu0 %v1200
  %1400 = vmatmul.mubr.f32.gmra.mxu0 %v1199
  %v1401 = vpop.f32.mrf.mxu0
  %v1402 = vadd.f32 %v1278, %v1401
  %v1403 = vpop.f32.mrf.mxu0
  %1404 = vmatprep.mubr.f32.mxu0 %v1202
  %1405 = vmatmul.mubr.f32.gmra.mxu0 %v1201
  %v1406 = vpop.f32.mrf.mxu0
  %v1407 = vadd.f32 %v1278, %v1406
  %v1408 = vpop.f32.mrf.mxu0
  %1409 = vmatprep.mubr.f32.mxu0 %v1204
  %1410 = vmatmul.mubr.f32.gmra.mxu0 %v1203
  %v1411 = vpop.f32.mrf.mxu0
  %v1412 = vadd.f32 %v1278, %v1411
  %v1413 = vpop.f32.mrf.mxu0
  %1414 = vmatprep.mubr.f32.mxu0 %v1206
  %1415 = vmatmul.mubr.f32.gmra.mxu0 %v1205
  %v1416 = vpop.f32.mrf.mxu0
  %v1417 = vadd.f32 %v1278, %v1416
  %v1418 = vpop.f32.mrf.mxu0
  %1419 = vmatprep.mubr.f32.mxu0 %v1208
  %1420 = vmatmul.mubr.f32.gmra.mxu0 %v1207
  %v1421 = vpop.f32.mrf.mxu0
  %v1422 = vadd.f32 %v1278, %v1421
  %v1423 = vpop.f32.mrf.mxu0
  %1424 = vmatprep.mubr.f32.mxu0 %v1210
  %1425 = vmatmul.mubr.f32.gmra.mxu0 %v1209
  %v1426 = vpop.f32.mrf.mxu0
  %v1427 = vadd.f32 %v1278, %v1426
  %v1428 = vpop.f32.mrf.mxu0
  %1429 = vmatprep.mubr.f32.mxu0 %v1212
  %1430 = vmatmul.mubr.f32.gmra.mxu0 %v1211
  %v1431 = vpop.f32.mrf.mxu0
  %v1432 = vadd.f32 %v1278, %v1431
  %v1433 = vpop.f32.mrf.mxu0
  %1434 = vmatprep.mubr.f32.mxu0 %v1214
  %1435 = vmatmul.mubr.f32.gmra.mxu0 %v1213
  %v1436 = vpop.f32.mrf.mxu0
  %v1437 = vadd.f32 %v1278, %v1436
  %v1438 = vpop.f32.mrf.mxu0
  %1439 = vmatprep.mubr.f32.mxu0 %v1216
  %1440 = vmatmul.mubr.f32.gmra.mxu0 %v1215
  %v1441 = vpop.f32.mrf.mxu0
  %v1442 = vadd.f32 %v1278, %v1441
  %v1443 = vpop.f32.mrf.mxu0
  %1444 = vmatprep.mubr.f32.mxu0 %v1218
  %1445 = vmatmul.mubr.f32.gmra.mxu0 %v1217
  %v1446 = vpop.f32.mrf.mxu0
  %v1447 = vadd.f32 %v1278, %v1446
  %v1448 = vpop.f32.mrf.mxu0
  %1449 = vmatprep.mubr.f32.mxu0 %v1220
  %1450 = vmatmul.mubr.f32.gmra.mxu0 %v1219
  %v1451 = vpop.f32.mrf.mxu0
  %v1452 = vadd.f32 %v1278, %v1451
  %v1453 = vpop.f32.mrf.mxu0
  %1454 = vmatprep.mubr.f32.mxu0 %v1222
  %1455 = vmatmul.mubr.f32.gmra.mxu0 %v1221
  %v1456 = vpop.f32.mrf.mxu0
  %v1457 = vadd.f32 %v1278, %v1456
  %v1458 = vpop.f32.mrf.mxu0
  %1459 = vmatprep.mubr.f32.mxu0 %v1224
  %1460 = vmatmul.mubr.f32.gmra.mxu0 %v1223
  %v1461 = vpop.f32.mrf.mxu0
  %v1462 = vadd.f32 %v1278, %v1461
  %v1463 = vpop.f32.mrf.mxu0
  %1464 = vmatprep.mubr.f32.mxu0 %v1226
  %1465 = vmatmul.mubr.f32.gmra.mxu0 %v1225
  %v1466 = vpop.f32.mrf.mxu0
  %v1467 = vadd.f32 %v1278, %v1466
  %v1468 = vpop.f32.mrf.mxu0
  %1469 = vmatprep.mubr.f32.mxu0 %v1228
  %1470 = vmatmul.mubr.f32.gmra.mxu0 %v1227
  %v1471 = vpop.f32.mrf.mxu0
  %v1472 = vadd.f32 %v1278, %v1471
  %v1473 = vpop.f32.mrf.mxu0
  %1474 = vmatprep.mubr.f32.mxu0 %v1230
  %1475 = vmatmul.mubr.f32.gmra.mxu0 %v1229
  %v1476 = vpop.f32.mrf.mxu0
  %v1477 = vadd.f32 %v1278, %v1476
  %v1478 = vpop.f32.mrf.mxu0
  %1479 = vmatprep.mubr.f32.mxu0 %v1232
  %1480 = vmatmul.mubr.f32.gmra.mxu0 %v1231
  %v1481 = vpop.f32.mrf.mxu0
  %v1482 = vadd.f32 %v1278, %v1481
  %v1483 = vpop.f32.mrf.mxu0
  %1484 = vmatprep.mubr.f32.mxu0 %v1234
  %1485 = vmatmul.mubr.f32.gmra.mxu0 %v1233
  %v1486 = vpop.f32.mrf.mxu0
  %v1487 = vadd.f32 %v1278, %v1486
  %v1488 = vpop.f32.mrf.mxu0
  %1489 = vmatprep.mubr.f32.mxu0 %v1236
  %1490 = vmatmul.mubr.f32.gmra.mxu0 %v1235
  %v1491 = vpop.f32.mrf.mxu0
  %v1492 = vadd.f32 %v1278, %v1491
  %v1493 = vpop.f32.mrf.mxu0
  %1494 = vmatprep.mubr.f32.mxu0 %v1238
  %1495 = vmatmul.mubr.f32.gmra.mxu0 %v1237
  %v1496 = vpop.f32.mrf.mxu0
  %v1497 = vadd.f32 %v1278, %v1496
  %v1498 = vpop.f32.mrf.mxu0
  %1499 = vmatprep.mubr.f32.mxu0 %v1240
  %1500 = vmatmul.mubr.f32.gmra.mxu0 %v1239
  %v1501 = vpop.f32.mrf.mxu0
  %v1502 = vadd.f32 %v1278, %v1501
  %v1503 = vpop.f32.mrf.mxu0
  %1504 = vdwg.mxu0
  %v1505 = vadd.f32 %v32, %v1347
  %v1506 = vadd.f32 %v33, %v1352
  %v1507 = vadd.f32 %v34, %v1357
  %v1508 = vadd.f32 %v35, %v1362
  %v1509 = vadd.f32 %v36, %v1367
  %v1510 = vadd.f32 %v37, %v1372
  %v1511 = vadd.f32 %v38, %v1377
  %v1512 = vadd.f32 %v39, %v1382
  %v1513 = vadd.f32 %v40, %v1387
  %v1514 = vadd.f32 %v41, %v1392
  %v1515 = vadd.f32 %v42, %v1397
  %v1516 = vadd.f32 %v43, %v1402
  %v1517 = vadd.f32 %v44, %v1407
  %v1518 = vadd.f32 %v45, %v1412
  %v1519 = vadd.f32 %v46, %v1417
  %v1520 = vadd.f32 %v47, %v1422
  %v1521 = vadd.f32 %v48, %v1427
  %v1522 = vadd.f32 %v49, %v1432
  %v1523 = vadd.f32 %v50, %v1437
  %v1524 = vadd.f32 %v51, %v1442
  %v1525 = vadd.f32 %v52, %v1447
  %v1526 = vadd.f32 %v53, %v1452
  %v1527 = vadd.f32 %v54, %v1457
  %v1528 = vadd.f32 %v55, %v1462
  %v1529 = vadd.f32 %v56, %v1467
  %v1530 = vadd.f32 %v57, %v1472
  %v1531 = vadd.f32 %v58, %v1477
  %v1532 = vadd.f32 %v59, %v1482
  %v1533 = vadd.f32 %v60, %v1487
  %v1534 = vadd.f32 %v61, %v1492
  %v1535 = vadd.f32 %v62, %v1497
  %v1536 = vadd.f32 %v63, %v1502
  %1537 = vst.msk [vmem:[%s9] sm:$0xff] %vm73, %v1505
  %1538 = vst.msk [vmem:[%s9 + $0x8] sm:$0xff] %vm73, %v1506
  %1539 = vst.msk [vmem:[%s9 + $0x10] sm:$0xff] %vm73, %v1507
  %1540 = vst.msk [vmem:[%s9 + $0x18] sm:$0xff] %vm73, %v1508
  %1541 = vst.msk [vmem:[%s9 + $0x20] sm:$0xff] %vm73, %v1509
  %1542 = vst.msk [vmem:[%s9 + $0x28] sm:$0xff] %vm73, %v1510
  %1543 = vst.msk [vmem:[%s9 + $0x30] sm:$0xff] %vm73, %v1511
  %1544 = vst.msk [vmem:[%s9 + $0x38] sm:$0xff] %vm73, %v1512
  %1545 = vst.msk [vmem:[%s9 + $0x40] sm:$0xff] %vm73, %v1513
  %1546 = vst.msk [vmem:[%s9 + $0x48] sm:$0xff] %vm73, %v1514
  %1547 = vst.msk [vmem:[%s9 + $0x50] sm:$0xff] %vm73, %v1515
  %1548 = vst.msk [vmem:[%s9 + $0x58] sm:$0xff] %vm73, %v1516
  %1549 = vst.msk [vmem:[%s9 + $0x60] sm:$0xff] %vm73, %v1517
  %1550 = vst.msk [vmem:[%s9 + $0x68] sm:$0xff] %vm73, %v1518
  %1551 = vst.msk [vmem:[%s9 + $0x70] sm:$0xff] %vm73, %v1519
  %1552 = vst.msk [vmem:[%s9 + $0x78] sm:$0xff] %vm73, %v1520
  %1553 = vst.msk [vmem:[%s9 + $0x80] sm:$0xff] %vm73, %v1521
  %1554 = vst.msk [vmem:[%s9 + $0x88] sm:$0xff] %vm73, %v1522
  %1555 = vst.msk [vmem:[%s9 + $0x90] sm:$0xff] %vm73, %v1523
  %1556 = vst.msk [vmem:[%s9 + $0x98] sm:$0xff] %vm73, %v1524
  %1557 = vst.msk [vmem:[%s9 + $0xa0] sm:$0xff] %vm73, %v1525
  %1558 = vst.msk [vmem:[%s9 + $0xa8] sm:$0xff] %vm73, %v1526
  %1559 = vst.msk [vmem:[%s9 + $0xb0] sm:$0xff] %vm73, %v1527
  %1560 = vst.msk [vmem:[%s9 + $0xb8] sm:$0xff] %vm73, %v1528
  %1561 = vst.msk [vmem:[%s9 + $0xc0] sm:$0xff] %vm73, %v1529
  %1562 = vst.msk [vmem:[%s9 + $0xc8] sm:$0xff] %vm73, %v1530
  %1563 = vst.msk [vmem:[%s9 + $0xd0] sm:$0xff] %vm73, %v1531
  %1564 = vst.msk [vmem:[%s9 + $0xd8] sm:$0xff] %vm73, %v1532
  %1565 = vst.msk [vmem:[%s9 + $0xe0] sm:$0xff] %vm73, %v1533
  %1566 = vst.msk [vmem:[%s9 + $0xe8] sm:$0xff] %vm73, %v1534
  %1567 = vst.msk [vmem:[%s9 + $0xf0] sm:$0xff] %vm73, %v1535
  %1568 = vst.msk [vmem:[%s9 + $0xf8] sm:$0xff] %vm73, %v1536
  // Predicated region
  $region38: #{tpu_custom_call.1} parent=0 // pred_check
    _
  $region39: #{tpu_custom_call.1} parent=0 // pred_check_branch
    %1570 = sbr.rel (0) target = $region41
  $region40: #{tpu_custom_call.1} parent=0 // pred_region
    _
  $region41: #{tpu_custom_call.1} parent=0 // pred_fallthru
    _
  // Predicated region
  $region42: #{tpu_custom_call.1} parent=0 // pred_check
    _
  $region43: #{tpu_custom_call.1} parent=0 // pred_check_branch
    %1572 = sbr.rel (0) target = $region45
  $region44: #{tpu_custom_call.1} parent=0 // pred_region
    _
  $region45: #{tpu_custom_call.1} parent=0 // pred_fallthru
    _

</llo_original>
